<compile_context>
chip_gen: v7x
topology: tpu7x:2x2x1
jax: 0.10.0
libtpu: 0.0.40
codegen_flags: <defaults>
</compile_context>

<pallas_src>
import jax
import jax.numpy as jnp
import numpy as np
from jax.experimental import pallas as pl
from jax.experimental.pallas import tpu as pltpu

_EPS = 1e-5                          # nn.BatchNorm2d default eps
_VMEM_LIMIT = 32 * 1024 * 1024       # safe scoped-VMEM budget on v5e/v6e/v7x
_TILE_BUDGET = 16 * 1024 * 1024      # VMEM earmarked for double-buffered tiles


# ----------------------------- Pallas kernels ------------------------------

def _gemm_stats_kernel(p_ref, w_ref, y_ref, stat_ref):
    """Pass 1: conv-as-GEMM (bf16 MXU, f32 accum) + per-tile BN partial stats."""
    y = jnp.dot(p_ref[...], w_ref[...], preferred_element_type=jnp.float32)
    y_ref[...] = y
    s = jnp.concatenate([jnp.sum(y, axis=0, keepdims=True),
                         jnp.sum(y * y, axis=0, keepdims=True)], axis=0)
    stat_ref[...] = s.reshape(stat_ref.shape)


def _gemm_stats_skip_kernel(p_ref, w_ref, xs_ref, w3_ref,
                            y_ref, stat_ref, skip_ref):
    """Pass 1 with the 1x1-conv skip GEMM fused in (rides the idle MXU)."""
    y = jnp.dot(p_ref[...], w_ref[...], preferred_element_type=jnp.float32)
    y_ref[...] = y
    s = jnp.concatenate([jnp.sum(y, axis=0, keepdims=True),
                         jnp.sum(y * y, axis=0, keepdims=True)], axis=0)
    stat_ref[...] = s.reshape(stat_ref.shape)
    skip_ref[...] = jnp.dot(xs_ref[...], w3_ref[...],
                            preferred_element_type=jnp.float32)


def _bn_relu_kernel(y_ref, scale_ref, shift_ref, o_ref):
    """Pass 2: y * scale + shift, ReLU (pure streaming, lane-dense layout)."""
    o_ref[...] = jnp.maximum(
        y_ref[...] * scale_ref[...] + shift_ref[...], 0.0).astype(o_ref.dtype)


def _bn_add_relu_kernel(y_ref, scale_ref, shift_ref, skip_ref, o_ref):
    """Pass 2: y * scale + shift + skip, ReLU."""
    o_ref[...] = jnp.maximum(
        y_ref[...] * scale_ref[...] + shift_ref[...] + skip_ref[...],
        0.0).astype(o_ref.dtype)


# ------------------------------ call wrappers -------------------------------

def _floor_pow2(n):
    n = max(int(n), 1)
    return 1 << (n.bit_length() - 1)


def _pick_tile(n, row_bytes, cap=2048):
    """Largest power-of-two row-tile (>=8) dividing n that fits the budget."""
    t = min(cap, _floor_pow2(_TILE_BUDGET // max(int(row_bytes), 1)))
    t = max(t, 8)
    while t >= 8:
        if n % t == 0:
            return t
        t //= 2
    return n


def _compiler_params():
    return pltpu.CompilerParams(dimension_semantics=("parallel",),
                                vmem_limit_bytes=_VMEM_LIMIT)


def _conv_gemm_stats(patches, w, xs=None, w3=None):
    """Pass 1.  patches (M, K) bf16, w (K, C) bf16  ->
    y (M, C) f32, partial stats (num_tiles, 2, C) f32 [, skip (M, C) f32]."""
    M, K = patches.shape
    C = w.shape[1]
    row_bytes = 2 * (K * 2 + C * 4)                 # double-buffered streams
    if xs is not None:
        row_bytes += 2 * (xs.shape[1] * 2 + C * 4)
    tm = _pick_tile(M, row_bytes)
    nt = M // tm

    in_specs = [pl.BlockSpec((tm, K), lambda i: (i, 0)),
                pl.BlockSpec((K, C), lambda i: (0, 0))]       # resident weights
    out_shape = [jax.ShapeDtypeStruct((M, C), jnp.float32),
                 jax.ShapeDtypeStruct((nt, 2, C), jnp.float32)]
    out_specs = [pl.BlockSpec((tm, C), lambda i: (i, 0)),
                 pl.BlockSpec((1, 2, C), lambda i: (i, 0, 0))]
    args = [patches, w]
    flops = 2 * M * K * C
    bytes_accessed = M * K * 2 + K * C * 2 + M * C * 4 + nt * 2 * C * 4

    if xs is None:
        kernel = _gemm_stats_kernel
    else:
        kernel = _gemm_stats_skip_kernel
        cin = xs.shape[1]
        in_specs += [pl.BlockSpec((tm, cin), lambda i: (i, 0)),
                     pl.BlockSpec((cin, C), lambda i: (0, 0))]
        out_shape.append(jax.ShapeDtypeStruct((M, C), jnp.float32))
        out_specs.append(pl.BlockSpec((tm, C), lambda i: (i, 0)))
        args += [xs, w3]
        flops += 2 * M * cin * C
        bytes_accessed += M * cin * 2 + cin * C * 2 + M * C * 4

    return pl.pallas_call(
        kernel,
        grid=(nt,),
        in_specs=in_specs,
        out_specs=out_specs,
        out_shape=out_shape,
        compiler_params=_compiler_params(),
        cost_estimate=pl.CostEstimate(flops=int(flops), transcendentals=0,
                                      bytes_accessed=int(bytes_accessed)),
    )(*args)


def _bn_scale_shift(stats, count, gamma, beta):
    """Fold batch-statistics BN into one per-channel scale/shift (f32)."""
    s = jnp.sum(stats, axis=0)                            # (2, C)
    mean = s[0] / count
    var = jnp.maximum(s[1] / count - mean * mean, 0.0)    # biased variance
    scale = gamma * jax.lax.rsqrt(var + _EPS)
    shift = beta - mean * scale
    return scale, shift


def _bn_act(y_raw, scale, shift, skip=None, out_dtype=jnp.float32):
    """Pass 2: normalize + (skip add) + ReLU, tiled, lane-dense when possible."""
    M, C = y_raw.shape
    flat = (128 % C == 0) and ((M * C) % 128 == 0)
    if flat:
        L = 128
        R = (M * C) // 128
        y2 = y_raw.reshape(R, L)                    # row-major compatible view
        scale2 = jnp.tile(scale, L // C).reshape(1, L)
        shift2 = jnp.tile(shift, L // C).reshape(1, L)
        skip2 = None if skip is None else skip.reshape(R, L)
    else:
        R, L = M, C
        y2 = y_raw
        scale2 = scale.reshape(1, C)
        shift2 = shift.reshape(1, C)
        skip2 = skip

    out_bytes = jnp.dtype(out_dtype).itemsize
    row_bytes = 2 * (L * 4 + L * out_bytes + (L * 4 if skip2 is not None else 0))
    tr = _pick_tile(R, row_bytes)
    nt = R // tr

    in_specs = [pl.BlockSpec((tr, L), lambda i: (i, 0)),
                pl.BlockSpec((1, L), lambda i: (0, 0)),     # resident scale
                pl.BlockSpec((1, L), lambda i: (0, 0))]     # resident shift
    args = [y2, scale2, shift2]
    if skip2 is None:
        kernel = _bn_relu_kernel
    else:
        kernel = _bn_add_relu_kernel
        in_specs.append(pl.BlockSpec((tr, L), lambda i: (i, 0)))
        args.append(skip2)

    bytes_accessed = R * L * (4 + out_bytes + (4 if skip2 is not None else 0))
    out = pl.pallas_call(
        kernel,
        grid=(nt,),
        in_specs=in_specs,
        out_specs=pl.BlockSpec((tr, L), lambda i: (i, 0)),
        out_shape=jax.ShapeDtypeStruct((R, L), out_dtype),
        compiler_params=_compiler_params(),
        cost_estimate=pl.CostEstimate(flops=int(3 * R * L), transcendentals=0,
                                      bytes_accessed=int(bytes_accessed)),
    )(*args)
    return out.reshape(M, C)


# ------------------------------- glue (JAX) ---------------------------------

def _im2col_3x3(x, stride):
    """x: (N, H, W, C) -> patches (N*Ho*Wo, 9*C), pad=1, kernel=3x3.
    Preserves the input dtype (call with bf16 to halve the 9x intermediate)."""
    N, H, W, C = x.shape
    xp = jnp.pad(x, ((0, 0), (1, 1), (1, 1), (0, 0)))
    Ho = (H + 2 - 3) // stride + 1
    Wo = (W + 2 - 3) // stride + 1
    cols = []
    for ky in range(3):
        for kx in range(3):
            cols.append(xp[:, ky:ky + (Ho - 1) * stride + 1:stride,
                           kx:kx + (Wo - 1) * stride + 1:stride, :])
    patches = jnp.stack(cols, axis=3)              # (N, Ho, Wo, 9, C)
    return patches.reshape(N * Ho * Wo, 9 * C), Ho, Wo


def _residual_forward(x, params, stride, use_1x1):
    """One `Residual` unit.  x: (N, H, W, Cin) float32 NHWC."""
    N, H, W, Cin = x.shape
    Cout = params["w1"].shape[-1]

    # conv1 (3x3, stride): pass 1 = GEMM + batch stats (+ fused 1x1 skip GEMM).
    # Cast to bf16 *before* im2col so the 9x patch matrix is built in bf16.
    x_bf = x.astype(jnp.bfloat16)
    p1, Ho, Wo = _im2col_3x3(x_bf, stride)
    M = N * Ho * Wo
    w1 = params["w1"].reshape(9 * Cin, Cout).astype(jnp.bfloat16)
    if use_1x1:
        xs = x_bf[:, ::stride, ::stride, :].reshape(M, Cin)
        w3 = params["w3"].astype(jnp.bfloat16)
        y1_raw, stats1, skip = _conv_gemm_stats(p1, w1, xs, w3)
    else:
        y1_raw, stats1 = _conv_gemm_stats(p1, w1)
        skip = x.reshape(M, Cout)                  # identity: Cin==Cout, stride 1

    # bn1 + relu (pass 2, lane-dense streaming); emit bf16 directly since the
    # only consumer is conv2's im2col GEMM (math stays f32 in-kernel).
    scale1, shift1 = _bn_scale_shift(stats1, M, params["g1"], params["b1"])
    y1 = _bn_act(y1_raw, scale1, shift1,
                 out_dtype=jnp.bfloat16).reshape(N, Ho, Wo, Cout)

    # conv2 (3x3, stride 1): pass 1
    p2, _, _ = _im2col_3x3(y1, 1)
    w2 = params["w2"].reshape(9 * Cout, Cout).astype(jnp.bfloat16)
    y2_raw, stats2 = _conv_gemm_stats(p2, w2)

    # bn2 + skip + relu (pass 2); unit output stays f32 (module semantics).
    scale2, shift2 = _bn_scale_shift(stats2, M, params["g2"], params["b2"])
    out = _bn_act(y2_raw, scale2, shift2, skip=skip, out_dtype=jnp.float32)
    return out.reshape(N, Ho, Wo, Cout)


def residual_block_forward(x_nchw, blocks):
    """`ResidualBlock.forward`.  x_nchw: (N, C, H, W).  Returns NCHW."""
    x = jnp.transpose(x_nchw, (0, 2, 3, 1)).astype(jnp.float32)   # NCHW -> NHWC
    for params, stride, use_1x1 in blocks:
        x = _residual_forward(x, params, stride, use_1x1)
    return jnp.transpose(x, (0, 3, 1, 2))                         # NHWC -> NCHW


# ---------------------------- parameter setup -------------------------------

def _init_residual_params(key, cin, cout, use_1x1):
    k1, k2, k3 = jax.random.split(key, 3)
    p = {
        # conv weights as (kh, kw, Cin, Cout) ~ HWIO (matches im2col ordering)
        "w1": 0.1 * jax.random.normal(k1, (3, 3, cin, cout), jnp.float32),
        "w2": 0.1 * jax.random.normal(k2, (3, 3, cout, cout), jnp.float32),
        # BatchNorm affine params (PyTorch default init: gamma=1, beta=0)
        "g1": jnp.ones((cout,), jnp.float32),
        "b1": jnp.zeros((cout,), jnp.float32),
        "g2": jnp.ones((cout,), jnp.float32),
        "b2": jnp.zeros((cout,), jnp.float32),
    }
    if use_1x1:
        p["w3"] = 0.1 * jax.random.normal(k3, (cin, cout), jnp.float32)
    return p


def init_residual_block(key, in_ch, out_ch, down_sample=False, repeat_num=1):
    """Mirror of ResidualBlock.__init__: list of (params, stride, use_1x1)."""
    blocks = []
    keys = jax.random.split(key, repeat_num)
    for i in range(repeat_num):
        if i == 0:
            stride = 2 if down_sample else 1
            blocks.append((_init_residual_params(keys[i], in_ch, out_ch, True),
                           stride, True))
        else:
            blocks.append((_init_residual_params(keys[i], out_ch, out_ch, False),
                           1, False))
    return blocks


# ---------------------------- pure-JAX reference ----------------------------

def _bn_ref(y, gamma, beta):
    mean = jnp.mean(y, axis=(0, 1, 2))
    var = jnp.mean((y - mean) ** 2, axis=(0, 1, 2))
    return (y - mean) * jax.lax.rsqrt(var + _EPS) * gamma + beta


def _residual_block_ref(x_nchw, blocks):
    """Reference with the same bf16 matmul operands / f32 accumulation."""
    x = jnp.transpose(x_nchw, (0, 2, 3, 1)).astype(jnp.float32)
    for params, stride, use_1x1 in blocks:
        y = jax.lax.conv_general_dilated(
            x.astype(jnp.bfloat16), params["w1"].astype(jnp.bfloat16),
            window_strides=(stride, stride), padding=((1, 1), (1, 1)),
            dimension_numbers=("NHWC", "HWIO", "NHWC"),
            preferred_element_type=jnp.float32)
        y = jnp.maximum(_bn_ref(y, params["g1"], params["b1"]), 0.0)
        y = jax.lax.conv_general_dilated(
            y.astype(jnp.bfloat16), params["w2"].astype(jnp.bfloat16),
            window_strides=(1, 1), padding=((1, 1), (1, 1)),
            dimension_numbers=("NHWC", "HWIO", "NHWC"),
            preferred_element_type=jnp.float32)
        y = _bn_ref(y, params["g2"], params["b2"])
        if use_1x1:
            skip = jnp.einsum("nhwc,cd->nhwd",
                              x[:, ::stride, ::stride, :].astype(jnp.bfloat16),
                              params["w3"].astype(jnp.bfloat16),
                              preferred_element_type=jnp.float32)
        else:
            skip = x
        x = jnp.maximum(y + skip, 0.0)
    return jnp.transpose(x, (0, 3, 1, 2))


# --------------------------------- main --------------------------------------

if __name__ == "__main__":
    key = jax.random.PRNGKey(0)
    k_x, k_p = jax.random.split(key)

    # ResidualBlock(in_ch=4, out_ch=8, down_sample=True, repeat_num=2)
    in_ch, out_ch = 4, 8
    x = jax.random.normal(k_x, (2, in_ch, 16, 16), jnp.float32)    # NCHW input

    blocks = init_residual_block(k_p, in_ch, out_ch,
                                 down_sample=True, repeat_num=2)

    fwd = jax.jit(lambda v: residual_block_forward(v, blocks))
    out = jax.block_until_ready(fwd(x))

    assert out.shape == (2, out_ch, 8, 8), out.shape   # stride-2 downsample
    assert bool(jnp.all(jnp.isfinite(out)))
    assert bool(jnp.all(out >= 0.0))                   # final ReLU

    ref = jax.block_until_ready(_residual_block_ref(x, blocks))
    np.testing.assert_allclose(np.asarray(out), np.asarray(ref),
                               atol=1e-2, rtol=1e-2)
    print("KERNEL_OK")
</pallas_src>

<mosaic_0001>
module attributes {stable_mosaic.version = 11 : i64} {
  func.func @_gemm_stats_skip_kernel(%arg0: i32, %arg1: memref<128x36xbf16, #tpu.memory_space<vmem>>, %arg2: memref<36x8xbf16, #tpu.memory_space<vmem>>, %arg3: memref<128x4xbf16, #tpu.memory_space<vmem>>, %arg4: memref<4x8xbf16, #tpu.memory_space<vmem>>, %arg5: memref<128x8xf32, #tpu.memory_space<vmem>>, %arg6: memref<1x2x8xf32, #tpu.memory_space<vmem>>, %arg7: memref<128x8xf32, #tpu.memory_space<vmem>>) attributes {dimension_semantics = [#tpu.dimension_semantics<parallel>], iteration_bounds = array<i64: 1>, scalar_prefetch = 0 : i64, scratch_operands = 0 : i64, tpu.core_type = #tpu.core_type<tc>, window_params = [{transform_indices = @transform_0, window_bounds = array<i64: 128, 36>}, {pipeline_mode = #tpu.pipeline_mode<synchronous>, transform_indices = @transform_1, window_bounds = array<i64: 36, 8>}, {transform_indices = @transform_2, window_bounds = array<i64: 128, 4>}, {pipeline_mode = #tpu.pipeline_mode<synchronous>, transform_indices = @transform_3, window_bounds = array<i64: 4, 8>}, {transform_indices = @transform_4, window_bounds = array<i64: 128, 8>}, {transform_indices = @transform_5, window_bounds = array<i64: 1, 2, 8>}, {transform_indices = @transform_6, window_bounds = array<i64: 128, 8>}]} {
    %c0 = arith.constant 0 : index
    %c0_0 = arith.constant 0 : index
    %0 = vector.load %arg1[%c0, %c0_0] : memref<128x36xbf16, #tpu.memory_space<vmem>>, vector<128x36xbf16>
    %c0_1 = arith.constant 0 : index
    %c0_2 = arith.constant 0 : index
    %1 = vector.load %arg2[%c0_1, %c0_2] : memref<36x8xbf16, #tpu.memory_space<vmem>>, vector<36x8xbf16>
    %cst = arith.constant dense<0.000000e+00> : vector<128x8xf32>
    %2 = tpu.matmul %0, %1, %cst {dimension_numbers = #tpu.dot_dimension_numbers<[1], [0], [0], [1], [0, 0, 1, 1], [], []>} : vector<128x36xbf16>, vector<36x8xbf16>, vector<128x8xf32> -> vector<128x8xf32>
    %c0_3 = arith.constant 0 : index
    %c0_4 = arith.constant 0 : index
    %3 = vector.load %arg5[%c0_3, %c0_4] : memref<128x8xf32, #tpu.memory_space<vmem>>, vector<128x8xf32>
    tpu.vector_store %arg5[%c0_3, %c0_4], %2 {strides = array<i32>} : memref<128x8xf32, #tpu.memory_space<vmem>>, vector<128x8xf32>,
    %cst_5 = arith.constant dense<0.000000e+00> : vector<8xf32>
    %4 = vector.multi_reduction <add>, %2, %cst_5 [0] : vector<128x8xf32> to vector<8xf32>
    %5 = vector.shape_cast %4 : vector<8xf32> to vector<1x8xf32>
    %6 = arith.mulf %2, %2 : vector<128x8xf32>
    %cst_6 = arith.constant dense<0.000000e+00> : vector<8xf32>
    %7 = vector.multi_reduction <add>, %6, %cst_6 [0] : vector<128x8xf32> to vector<8xf32>
    %8 = vector.shape_cast %7 : vector<8xf32> to vector<1x8xf32>
    %9 = tpu.concatenate %5, %8 in 0 : vector<1x8xf32>, vector<1x8xf32> -> vector<2x8xf32>
    %10 = vector.shape_cast %9 : vector<2x8xf32> to vector<1x2x8xf32>
    %c0_7 = arith.constant 0 : index
    %c0_8 = arith.constant 0 : index
    %c0_9 = arith.constant 0 : index
    %11 = vector.load %arg6[%c0_7, %c0_8, %c0_9] : memref<1x2x8xf32, #tpu.memory_space<vmem>>, vector<1x2x8xf32>
    tpu.vector_store %arg6[%c0_7, %c0_8, %c0_9], %10 {strides = array<i32>} : memref<1x2x8xf32, #tpu.memory_space<vmem>>, vector<1x2x8xf32>,
    %c0_10 = arith.constant 0 : index
    %c0_11 = arith.constant 0 : index
    %12 = vector.load %arg3[%c0_10, %c0_11] : memref<128x4xbf16, #tpu.memory_space<vmem>>, vector<128x4xbf16>
    %c0_12 = arith.constant 0 : index
    %c0_13 = arith.constant 0 : index
    %13 = vector.load %arg4[%c0_12, %c0_13] : memref<4x8xbf16, #tpu.memory_space<vmem>>, vector<4x8xbf16>
    %cst_14 = arith.constant dense<0.000000e+00> : vector<128x8xf32>
    %14 = tpu.matmul %12, %13, %cst_14 {dimension_numbers = #tpu.dot_dimension_numbers<[1], [0], [0], [1], [0, 0, 1, 1], [], []>} : vector<128x4xbf16>, vector<4x8xbf16>, vector<128x8xf32> -> vector<128x8xf32>
    %c0_15 = arith.constant 0 : index
    %c0_16 = arith.constant 0 : index
    %15 = vector.load %arg7[%c0_15, %c0_16] : memref<128x8xf32, #tpu.memory_space<vmem>>, vector<128x8xf32>
    tpu.vector_store %arg7[%c0_15, %c0_16], %14 {strides = array<i32>} : memref<128x8xf32, #tpu.memory_space<vmem>>, vector<128x8xf32>,
    return
  }
  func.func @transform_0(%arg0: i32) -> (i32, i32) {
    %c0_i32 = arith.constant 0 : i32
    %c0_i32_0 = arith.constant 0 : i32
    return %arg0, %c0_i32 : i32, i32
  }
  func.func @transform_1(%arg0: i32) -> (i32, i32) {
    %c0_i32 = arith.constant 0 : i32
    %c0_i32_0 = arith.constant 0 : i32
    %c0_i32_1 = arith.constant 0 : i32
    return %c0_i32, %c0_i32_0 : i32, i32
  }
  func.func @transform_2(%arg0: i32) -> (i32, i32) {
    %c0_i32 = arith.constant 0 : i32
    %c0_i32_0 = arith.constant 0 : i32
    return %arg0, %c0_i32 : i32, i32
  }
  func.func @transform_3(%arg0: i32) -> (i32, i32) {
    %c0_i32 = arith.constant 0 : i32
    %c0_i32_0 = arith.constant 0 : i32
    %c0_i32_1 = arith.constant 0 : i32
    return %c0_i32, %c0_i32_0 : i32, i32
  }
  func.func @transform_4(%arg0: i32) -> (i32, i32) {
    %c0_i32 = arith.constant 0 : i32
    %c0_i32_0 = arith.constant 0 : i32
    return %arg0, %c0_i32 : i32, i32
  }
  func.func @transform_5(%arg0: i32) -> (i32, i32, i32) {
    %c0_i32 = arith.constant 0 : i32
    %c0_i32_0 = arith.constant 0 : i32
    %c0_i32_1 = arith.constant 0 : i32
    return %arg0, %c0_i32, %c0_i32_0 : i32, i32, i32
  }
  func.func @transform_6(%arg0: i32) -> (i32, i32) {
    %c0_i32 = arith.constant 0 : i32
    %c0_i32_0 = arith.constant 0 : i32
    return %arg0, %c0_i32 : i32, i32
  }
}

module attributes {stable_mosaic.version = 11 : i64} {
  func.func @_bn_relu_kernel(%arg0: i32, %arg1: memref<8x128xf32, #tpu.memory_space<vmem>>, %arg2: memref<1x128xf32, #tpu.memory_space<vmem>>, %arg3: memref<1x128xf32, #tpu.memory_space<vmem>>, %arg4: memref<8x128xbf16, #tpu.memory_space<vmem>>) attributes {dimension_semantics = [#tpu.dimension_semantics<parallel>], iteration_bounds = array<i64: 1>, scalar_prefetch = 0 : i64, scratch_operands = 0 : i64, tpu.core_type = #tpu.core_type<tc>, window_params = [{transform_indices = @transform_0, window_bounds = array<i64: 8, 128>}, {pipeline_mode = #tpu.pipeline_mode<synchronous>, transform_indices = @transform_1, window_bounds = array<i64: 1, 128>}, {pipeline_mode = #tpu.pipeline_mode<synchronous>, transform_indices = @transform_2, window_bounds = array<i64: 1, 128>}, {transform_indices = @transform_3, window_bounds = array<i64: 8, 128>}]} {
    %c0 = arith.constant 0 : index
    %c0_0 = arith.constant 0 : index
    %0 = vector.load %arg1[%c0, %c0_0] : memref<8x128xf32, #tpu.memory_space<vmem>>, vector<8x128xf32>
    %c0_1 = arith.constant 0 : index
    %c0_2 = arith.constant 0 : index
    %1 = vector.load %arg2[%c0_1, %c0_2] : memref<1x128xf32, #tpu.memory_space<vmem>>, vector<1x128xf32>
    %2 = vector.broadcast %1 : vector<1x128xf32> to vector<8x128xf32>
    %3 = arith.mulf %0, %2 : vector<8x128xf32>
    %c0_3 = arith.constant 0 : index
    %c0_4 = arith.constant 0 : index
    %4 = vector.load %arg3[%c0_3, %c0_4] : memref<1x128xf32, #tpu.memory_space<vmem>>, vector<1x128xf32>
    %5 = vector.broadcast %4 : vector<1x128xf32> to vector<8x128xf32>
    %6 = arith.addf %3, %5 : vector<8x128xf32>
    %cst = arith.constant 0.000000e+00 : f32
    %7 = vector.broadcast %cst : f32 to vector<8x128xf32>
    %8 = arith.maximumf %6, %7 : vector<8x128xf32>
    %9 = arith.truncf %8 : vector<8x128xf32> to vector<8x128xbf16>
    %c0_5 = arith.constant 0 : index
    %c0_6 = arith.constant 0 : index
    %10 = vector.load %arg4[%c0_5, %c0_6] : memref<8x128xbf16, #tpu.memory_space<vmem>>, vector<8x128xbf16>
    tpu.vector_store %arg4[%c0_5, %c0_6], %9 {strides = array<i32>} : memref<8x128xbf16, #tpu.memory_space<vmem>>, vector<8x128xbf16>,
    return
  }
  func.func @transform_0(%arg0: i32) -> (i32, i32) {
    %c0_i32 = arith.constant 0 : i32
    %c0_i32_0 = arith.constant 0 : i32
    return %arg0, %c0_i32 : i32, i32
  }
  func.func @transform_1(%arg0: i32) -> (i32, i32) {
    %c0_i32 = arith.constant 0 : i32
    %c0_i32_0 = arith.constant 0 : i32
    %c0_i32_1 = arith.constant 0 : i32
    return %c0_i32, %c0_i32_0 : i32, i32
  }
  func.func @transform_2(%arg0: i32) -> (i32, i32) {
    %c0_i32 = arith.constant 0 : i32
    %c0_i32_0 = arith.constant 0 : i32
    %c0_i32_1 = arith.constant 0 : i32
    return %c0_i32, %c0_i32_0 : i32, i32
  }
  func.func @transform_3(%arg0: i32) -> (i32, i32) {
    %c0_i32 = arith.constant 0 : i32
    %c0_i32_0 = arith.constant 0 : i32
    return %arg0, %c0_i32 : i32, i32
  }
}

module attributes {stable_mosaic.version = 11 : i64} {
  func.func @_gemm_stats_kernel(%arg0: i32, %arg1: memref<128x72xbf16, #tpu.memory_space<vmem>>, %arg2: memref<72x8xbf16, #tpu.memory_space<vmem>>, %arg3: memref<128x8xf32, #tpu.memory_space<vmem>>, %arg4: memref<1x2x8xf32, #tpu.memory_space<vmem>>) attributes {dimension_semantics = [#tpu.dimension_semantics<parallel>], iteration_bounds = array<i64: 1>, scalar_prefetch = 0 : i64, scratch_operands = 0 : i64, tpu.core_type = #tpu.core_type<tc>, window_params = [{transform_indices = @transform_0, window_bounds = array<i64: 128, 72>}, {pipeline_mode = #tpu.pipeline_mode<synchronous>, transform_indices = @transform_1, window_bounds = array<i64: 72, 8>}, {transform_indices = @transform_2, window_bounds = array<i64: 128, 8>}, {transform_indices = @transform_3, window_bounds = array<i64: 1, 2, 8>}]} {
    %c0 = arith.constant 0 : index
    %c0_0 = arith.constant 0 : index
    %0 = vector.load %arg1[%c0, %c0_0] : memref<128x72xbf16, #tpu.memory_space<vmem>>, vector<128x72xbf16>
    %c0_1 = arith.constant 0 : index
    %c0_2 = arith.constant 0 : index
    %1 = vector.load %arg2[%c0_1, %c0_2] : memref<72x8xbf16, #tpu.memory_space<vmem>>, vector<72x8xbf16>
    %cst = arith.constant dense<0.000000e+00> : vector<128x8xf32>
    %2 = tpu.matmul %0, %1, %cst {dimension_numbers = #tpu.dot_dimension_numbers<[1], [0], [0], [1], [0, 0, 1, 1], [], []>} : vector<128x72xbf16>, vector<72x8xbf16>, vector<128x8xf32> -> vector<128x8xf32>
    %c0_3 = arith.constant 0 : index
    %c0_4 = arith.constant 0 : index
    %3 = vector.load %arg3[%c0_3, %c0_4] : memref<128x8xf32, #tpu.memory_space<vmem>>, vector<128x8xf32>
    tpu.vector_store %arg3[%c0_3, %c0_4], %2 {strides = array<i32>} : memref<128x8xf32, #tpu.memory_space<vmem>>, vector<128x8xf32>,
    %cst_5 = arith.constant dense<0.000000e+00> : vector<8xf32>
    %4 = vector.multi_reduction <add>, %2, %cst_5 [0] : vector<128x8xf32> to vector<8xf32>
    %5 = vector.shape_cast %4 : vector<8xf32> to vector<1x8xf32>
    %6 = arith.mulf %2, %2 : vector<128x8xf32>
    %cst_6 = arith.constant dense<0.000000e+00> : vector<8xf32>
    %7 = vector.multi_reduction <add>, %6, %cst_6 [0] : vector<128x8xf32> to vector<8xf32>
    %8 = vector.shape_cast %7 : vector<8xf32> to vector<1x8xf32>
    %9 = tpu.concatenate %5, %8 in 0 : vector<1x8xf32>, vector<1x8xf32> -> vector<2x8xf32>
    %10 = vector.shape_cast %9 : vector<2x8xf32> to vector<1x2x8xf32>
    %c0_7 = arith.constant 0 : index
    %c0_8 = arith.constant 0 : index
    %c0_9 = arith.constant 0 : index
    %11 = vector.load %arg4[%c0_7, %c0_8, %c0_9] : memref<1x2x8xf32, #tpu.memory_space<vmem>>, vector<1x2x8xf32>
    tpu.vector_store %arg4[%c0_7, %c0_8, %c0_9], %10 {strides = array<i32>} : memref<1x2x8xf32, #tpu.memory_space<vmem>>, vector<1x2x8xf32>,
    return
  }
  func.func @transform_0(%arg0: i32) -> (i32, i32) {
    %c0_i32 = arith.constant 0 : i32
    %c0_i32_0 = arith.constant 0 : i32
    return %arg0, %c0_i32 : i32, i32
  }
  func.func @transform_1(%arg0: i32) -> (i32, i32) {
    %c0_i32 = arith.constant 0 : i32
    %c0_i32_0 = arith.constant 0 : i32
    %c0_i32_1 = arith.constant 0 : i32
    return %c0_i32, %c0_i32_0 : i32, i32
  }
  func.func @transform_2(%arg0: i32) -> (i32, i32) {
    %c0_i32 = arith.constant 0 : i32
    %c0_i32_0 = arith.constant 0 : i32
    return %arg0, %c0_i32 : i32, i32
  }
  func.func @transform_3(%arg0: i32) -> (i32, i32, i32) {
    %c0_i32 = arith.constant 0 : i32
    %c0_i32_0 = arith.constant 0 : i32
    %c0_i32_1 = arith.constant 0 : i32
    return %arg0, %c0_i32, %c0_i32_0 : i32, i32, i32
  }
}

module attributes {stable_mosaic.version = 11 : i64} {
  func.func @_bn_add_relu_kernel(%arg0: i32, %arg1: memref<8x128xf32, #tpu.memory_space<vmem>>, %arg2: memref<1x128xf32, #tpu.memory_space<vmem>>, %arg3: memref<1x128xf32, #tpu.memory_space<vmem>>, %arg4: memref<8x128xf32, #tpu.memory_space<vmem>>, %arg5: memref<8x128xf32, #tpu.memory_space<vmem>>) attributes {dimension_semantics = [#tpu.dimension_semantics<parallel>], iteration_bounds = array<i64: 1>, scalar_prefetch = 0 : i64, scratch_operands = 0 : i64, tpu.core_type = #tpu.core_type<tc>, window_params = [{transform_indices = @transform_0, window_bounds = array<i64: 8, 128>}, {pipeline_mode = #tpu.pipeline_mode<synchronous>, transform_indices = @transform_1, window_bounds = array<i64: 1, 128>}, {pipeline_mode = #tpu.pipeline_mode<synchronous>, transform_indices = @transform_2, window_bounds = array<i64: 1, 128>}, {transform_indices = @transform_3, window_bounds = array<i64: 8, 128>}, {transform_indices = @transform_4, window_bounds = array<i64: 8, 128>}]} {
    %c0 = arith.constant 0 : index
    %c0_0 = arith.constant 0 : index
    %0 = vector.load %arg1[%c0, %c0_0] : memref<8x128xf32, #tpu.memory_space<vmem>>, vector<8x128xf32>
    %c0_1 = arith.constant 0 : index
    %c0_2 = arith.constant 0 : index
    %1 = vector.load %arg2[%c0_1, %c0_2] : memref<1x128xf32, #tpu.memory_space<vmem>>, vector<1x128xf32>
    %2 = vector.broadcast %1 : vector<1x128xf32> to vector<8x128xf32>
    %3 = arith.mulf %0, %2 : vector<8x128xf32>
    %c0_3 = arith.constant 0 : index
    %c0_4 = arith.constant 0 : index
    %4 = vector.load %arg3[%c0_3, %c0_4] : memref<1x128xf32, #tpu.memory_space<vmem>>, vector<1x128xf32>
    %5 = vector.broadcast %4 : vector<1x128xf32> to vector<8x128xf32>
    %6 = arith.addf %3, %5 : vector<8x128xf32>
    %c0_5 = arith.constant 0 : index
    %c0_6 = arith.constant 0 : index
    %7 = vector.load %arg4[%c0_5, %c0_6] : memref<8x128xf32, #tpu.memory_space<vmem>>, vector<8x128xf32>
    %8 = arith.addf %6, %7 : vector<8x128xf32>
    %cst = arith.constant 0.000000e+00 : f32
    %9 = vector.broadcast %cst : f32 to vector<8x128xf32>
    %10 = arith.maximumf %8, %9 : vector<8x128xf32>
    %c0_7 = arith.constant 0 : index
    %c0_8 = arith.constant 0 : index
    %11 = vector.load %arg5[%c0_7, %c0_8] : memref<8x128xf32, #tpu.memory_space<vmem>>, vector<8x128xf32>
    tpu.vector_store %arg5[%c0_7, %c0_8], %10 {strides = array<i32>} : memref<8x128xf32, #tpu.memory_space<vmem>>, vector<8x128xf32>,
    return
  }
  func.func @transform_0(%arg0: i32) -> (i32, i32) {
    %c0_i32 = arith.constant 0 : i32
    %c0_i32_0 = arith.constant 0 : i32
    return %arg0, %c0_i32 : i32, i32
  }
  func.func @transform_1(%arg0: i32) -> (i32, i32) {
    %c0_i32 = arith.constant 0 : i32
    %c0_i32_0 = arith.constant 0 : i32
    %c0_i32_1 = arith.constant 0 : i32
    return %c0_i32, %c0_i32_0 : i32, i32
  }
  func.func @transform_2(%arg0: i32) -> (i32, i32) {
    %c0_i32 = arith.constant 0 : i32
    %c0_i32_0 = arith.constant 0 : i32
    %c0_i32_1 = arith.constant 0 : i32
    return %c0_i32, %c0_i32_0 : i32, i32
  }
  func.func @transform_3(%arg0: i32) -> (i32, i32) {
    %c0_i32 = arith.constant 0 : i32
    %c0_i32_0 = arith.constant 0 : i32
    return %arg0, %c0_i32 : i32, i32
  }
  func.func @transform_4(%arg0: i32) -> (i32, i32) {
    %c0_i32 = arith.constant 0 : i32
    %c0_i32_0 = arith.constant 0 : i32
    return %arg0, %c0_i32 : i32, i32
  }
}

</mosaic_0001>

<llo_original>
// kernel: tile.43
$region0: #{tile.43}
  #allocation0 [shape = 's32[1]{0}', space=sflag, size = 0x4, scoped, tag = 'scoped memory for tile.43']
  %s0 = inlined_call_operand.vmem [shape: f32[8], index: 0, kind: input, shape index: {}]
  %s1 = inlined_call_operand.vmem [shape: f32[16,8], index: 1, kind: output, shape index: {}]
  // Predicated region
  $region2: #{tile.43} parent=0 // pred_check
    _
  $region3: #{tile.43} parent=0 // pred_check_branch
    %3 = sbr.rel (0) target = $region5
  $region4: #{tile.43} parent=0 // pred_region
    _
  $region5: #{tile.43} parent=0 // pred_fallthru
    _
  %v4 = vld [vmem:[%s0] ss:$0 sm:$0xff]
  %5 = vst [vmem:[%s1] sm:$0xff] %v4
  %s6 = scalar_lea.vmem %s1, 8
  %7 = vst [vmem:[%s6] sm:$0xff] %v4

// kernel: tile.44
$region0: #{tile.44}
  %s0 = inlined_call_operand.vmem [shape: f32[16,8], index: 0, kind: input, shape index: {}]
  %s1 = inlined_call_operand.vmem [shape: f32[1,128], index: 1, kind: output, shape index: {}]
  $region1: #{tile.44} parent=0
    #allocation0 [shape = 'u8[4096]{0}', space=vmem, size = 0x1000, scoped, tag = 'scoped mem for output reshape']
    %v2 = vld [vmem:[%s0] sm:$0x1]
    %vm3 = vcmask 64512
    %4 = vst.msk [vmem:[#allocation0] sm:$0x1] %vm3, %v2
    %s5 = scalar_lea.vmem %s0, 15
    %v6 = vld [vmem:[%s5] sm:$0x1]
    %7 = vrot.lane.b32.xlu0 %v6, 120
    %v8 = vpop.permute.xlu0 %7
    %vm9 = vcmask 1048512
    %10 = vst.msk [vmem:[#allocation0] sm:$0x1] %vm9, %v8
    %s11 = scalar_lea.vmem %s0, 14
    %v12 = vld [vmem:[%s11] sm:$0x1]
    %13 = vrot.lane.b32.xlu0 %v12, 112
    %v14 = vpop.permute.xlu0 %13
    %vm15 = vcmask 982912
    %16 = vst.msk [vmem:[#allocation0] sm:$0x1] %vm15, %v14
    %s17 = scalar_lea.vmem %s0, 13
    %v18 = vld [vmem:[%s17] sm:$0x1]
    %19 = vrot.lane.b32.xlu0 %v18, 104
    %v20 = vpop.permute.xlu0 %19
    %vm21 = vcmask 917312
    %22 = vst.msk [vmem:[#allocation0] sm:$0x1] %vm21, %v20
    %s23 = scalar_lea.vmem %s0, 12
    %v24 = vld [vmem:[%s23] sm:$0x1]
    %25 = vrot.lane.b32.xlu0 %v24, 96
    %v26 = vpop.permute.xlu0 %25
    %vm27 = vcmask 851712
    %28 = vst.msk [vmem:[#allocation0] sm:$0x1] %vm27, %v26
    %s29 = scalar_lea.vmem %s0, 11
    %v30 = vld [vmem:[%s29] sm:$0x1]
    %31 = vrot.lane.b32.xlu0 %v30, 88
    %v32 = vpop.permute.xlu0 %31
    %vm33 = vcmask 786112
    %34 = vst.msk [vmem:[#allocation0] sm:$0x1] %vm33, %v32
    %s35 = scalar_lea.vmem %s0, 10
    %v36 = vld [vmem:[%s35] sm:$0x1]
    %37 = vrot.lane.b32.xlu0 %v36, 80
    %v38 = vpop.permute.xlu0 %37
    %vm39 = vcmask 720512
    %40 = vst.msk [vmem:[#allocation0] sm:$0x1] %vm39, %v38
    %s41 = scalar_lea.vmem %s0, 9
    %v42 = vld [vmem:[%s41] sm:$0x1]
    %43 = vrot.lane.b32.xlu0 %v42, 72
    %v44 = vpop.permute.xlu0 %43
    %vm45 = vcmask 654912
    %46 = vst.msk [vmem:[#allocation0] sm:$0x1] %vm45, %v44
    %s47 = scalar_lea.vmem %s0, 8
    %v48 = vld [vmem:[%s47] sm:$0x1]
    %49 = vrot.lane.b32.xlu0 %v48, 64
    %v50 = vpop.permute.xlu0 %49
    %vm51 = vcmask 589312
    %52 = vst.msk [vmem:[#allocation0] sm:$0x1] %vm51, %v50
    %s53 = scalar_lea.vmem %s0, 7
    %v54 = vld [vmem:[%s53] sm:$0x1]
    %55 = vrot.lane.b32.xlu0 %v54, 56
    %v56 = vpop.permute.xlu0 %55
    %vm57 = vcmask 523712
    %58 = vst.msk [vmem:[#allocation0] sm:$0x1] %vm57, %v56
    %s59 = scalar_lea.vmem %s0, 6
    %v60 = vld [vmem:[%s59] sm:$0x1]
    %61 = vrot.lane.b32.xlu0 %v60, 48
    %v62 = vpop.permute.xlu0 %61
    %vm63 = vcmask 458112
    %64 = vst.msk [vmem:[#allocation0] sm:$0x1] %vm63, %v62
    %s65 = scalar_lea.vmem %s0, 5
    %v66 = vld [vmem:[%s65] sm:$0x1]
    %67 = vrot.lane.b32.xlu0 %v66, 40
    %v68 = vpop.permute.xlu0 %67
    %vm69 = vcmask 392512
    %70 = vst.msk [vmem:[#allocation0] sm:$0x1] %vm69, %v68
    %s71 = scalar_lea.vmem %s0, 4
    %v72 = vld [vmem:[%s71] sm:$0x1]
    %73 = vrot.lane.b32.xlu0 %v72, 32
    %v74 = vpop.permute.xlu0 %73
    %vm75 = vcmask 326912
    %76 = vst.msk [vmem:[#allocation0] sm:$0x1] %vm75, %v74
    %s77 = scalar_lea.vmem %s0, 3
    %v78 = vld [vmem:[%s77] sm:$0x1]
    %79 = vrot.lane.b32.xlu0 %v78, 24
    %v80 = vpop.permute.xlu0 %79
    %vm81 = vcmask 261312
    %82 = vst.msk [vmem:[#allocation0] sm:$0x1] %vm81, %v80
    %s83 = scalar_lea.vmem %s0, 2
    %v84 = vld [vmem:[%s83] sm:$0x1]
    %85 = vrot.lane.b32.xlu0 %v84, 16
    %v86 = vpop.permute.xlu0 %85
    %vm87 = vcmask 195712
    %88 = vst.msk [vmem:[#allocation0] sm:$0x1] %vm87, %v86
    %s89 = scalar_lea.vmem %s0, 1
    %v90 = vld [vmem:[%s89] sm:$0x1]
    %91 = vrot.lane.b32.xlu0 %v90, 8
    %v92 = vpop.permute.xlu0 %91
    %vm93 = vcmask 130112
    %94 = vst.msk [vmem:[#allocation0] sm:$0x1] %vm93, %v92
    %s96 = sshllo.u32 0, 1
    %v98 = vld [vmem:[#allocation0] sm:%s96]
    %s99 = sshllo.u32 0, 1
    %100 = vst [vmem:[%s1] sm:%s99] %v98

// kernel: _lambda_.9
$region0: #{_lambda_.9}
  #allocation0 [shape = 'u32[]', space=smem, size = 0x4, offset = 0x4, fixed_abs, tag = 'smem constant byte address 0x4 - core index']
  #allocation1 [shape = 'u32[144,128]{1,0:T(1,128)}', space=vmem, size = 0x12000, scoped, tag = 'internal scratch']
  %s0 = inlined_call_operand.vmem [shape: f32[8,128], index: 0, kind: input, shape index: {}]
  %s1 = inlined_call_operand.vmem [shape: f32[1,128], index: 1, kind: input, shape index: {}]
  %s2 = inlined_call_operand.vmem [shape: f32[1,128], index: 2, kind: input, shape index: {}]
  %s3 = inlined_call_operand.vmem [shape: bf16[8,128], index: 3, kind: output, shape index: {}]
  %s4 = sld [smem:[#allocation0]]
  $region22: #{_lambda_.9} parent=0
    _
  %s6 = ssub.s32 1, %s4
  %s7 = scalar_select 0, %s6, %s4
  // Predicated region
  $region2: #{_lambda_.9} parent=0 // pred_check
    _
  $region3: #{_lambda_.9} parent=0 // pred_check_branch
    %9 = sbr.rel (0) target = $region5
  $region4: #{_lambda_.9} parent=0 // pred_region
    _
  $region5: #{_lambda_.9} parent=0 // pred_fallthru
    _
  // Predicated region
  $region6: #{_lambda_.9} parent=0 // pred_check
    _
  $region7: #{_lambda_.9} parent=0 // pred_check_branch
    %11 = sbr.rel (0) target = $region9
  $region8: #{_lambda_.9} parent=0 // pred_region
    _
  $region9: #{_lambda_.9} parent=0 // pred_fallthru
    _
  // Predicated region
  $region10: #{_lambda_.9} parent=0 // pred_check
    _
  $region11: #{_lambda_.9} parent=0 // pred_check_branch
    %13 = sbr.rel (0) target = $region13
  $region12: #{_lambda_.9} parent=0 // pred_region
    _
  $region13: #{_lambda_.9} parent=0 // pred_fallthru
    _
  %v14 = vld [vmem:[%s0] sm:$0xff]
  %v15 = vld [vmem:[%s1] sm:$0x1]
  %v17 = vlaneseq
  %v18 = vshrl.u32 %v17, 7
  %v19 = vsub.s32 0, %v18
  %v20 = vrot.slane %v15, %v19
  %v22 = vmul.f32 %v14, %v20
  %v23 = vld [vmem:[%s2] sm:$0x1]
  %v25 = vlaneseq
  %v26 = vshrl.u32 %v25, 7
  %v27 = vsub.s32 0, %v26
  %v28 = vrot.slane %v23, %v27
  %v30 = vadd.f32 %v22, %v28
  %v31 = vmax.f32 %v30, 0.0
  %v32 = vpack.c.bf16 %v31, %v31
  %33 = vst [vmem:[%s3] sm:$0xf] %v32
  // Predicated region
  $region14: #{_lambda_.9} parent=0 // pred_check
    _
  $region15: #{_lambda_.9} parent=0 // pred_check_branch
    %35 = sbr.rel (0) target = $region17
  $region16: #{_lambda_.9} parent=0 // pred_region
    _
  $region17: #{_lambda_.9} parent=0 // pred_fallthru
    _
  // Predicated region
  $region18: #{_lambda_.9} parent=0 // pred_check
    _
  $region19: #{_lambda_.9} parent=0 // pred_check_branch
    %37 = sbr.rel (0) target = $region21
  $region20: #{_lambda_.9} parent=0 // pred_region
    _
  $region21: #{_lambda_.9} parent=0 // pred_fallthru
    _

// kernel: _lambda_.8
$region0: #{_lambda_.8}
  #allocation0 [shape = 'u32[]', space=smem, size = 0x4, offset = 0x4, fixed_abs, tag = 'smem constant byte address 0x4 - core index']
  #allocation1 [shape = 'u32[144,128]{1,0:T(1,128)}', space=vmem, size = 0x12000, scoped, tag = 'internal scratch']
  %s0 = inlined_call_operand.vmem [shape: bf16[128,36], index: 0, kind: input, shape index: {}]
  %s1 = inlined_call_operand.vmem [shape: bf16[36,8], index: 1, kind: input, shape index: {}]
  %s2 = inlined_call_operand.vmem [shape: bf16[128,4], index: 2, kind: input, shape index: {}]
  %s3 = inlined_call_operand.vmem [shape: bf16[4,8], index: 3, kind: input, shape index: {}]
  %s4 = inlined_call_operand.vmem [shape: f32[128,8], index: 4, kind: output, shape index: {0}]
  %s5 = inlined_call_operand.vmem [shape: f32[1,2,8], index: 5, kind: output, shape index: {1}]
  %s6 = inlined_call_operand.vmem [shape: f32[128,8], index: 6, kind: output, shape index: {2}]
  %7 = xla_tuple %s4, %s5, %s6
  %s8 = sld [smem:[#allocation0]]
  $region42: #{_lambda_.8} parent=0
    _
  %s10 = ssub.s32 1, %s8
  %s11 = scalar_select 0, %s10, %s8
  // Predicated region
  $region2: #{_lambda_.8} parent=0 // pred_check
    _
  $region3: #{_lambda_.8} parent=0 // pred_check_branch
    %13 = sbr.rel (0) target = $region5
  $region4: #{_lambda_.8} parent=0 // pred_region
    _
  $region5: #{_lambda_.8} parent=0 // pred_fallthru
    _
  // Predicated region
  $region6: #{_lambda_.8} parent=0 // pred_check
    _
  $region7: #{_lambda_.8} parent=0 // pred_check_branch
    %15 = sbr.rel (0) target = $region9
  $region8: #{_lambda_.8} parent=0 // pred_region
    _
  $region9: #{_lambda_.8} parent=0 // pred_fallthru
    _
  // Predicated region
  $region10: #{_lambda_.8} parent=0 // pred_check
    _
  $region11: #{_lambda_.8} parent=0 // pred_check_branch
    %17 = sbr.rel (0) target = $region13
  $region12: #{_lambda_.8} parent=0 // pred_region
    _
  $region13: #{_lambda_.8} parent=0 // pred_fallthru
    _
  // Predicated region
  $region14: #{_lambda_.8} parent=0 // pred_check
    _
  $region15: #{_lambda_.8} parent=0 // pred_check_branch
    %19 = sbr.rel (0) target = $region17
  $region16: #{_lambda_.8} parent=0 // pred_region
    _
  $region17: #{_lambda_.8} parent=0 // pred_fallthru
    _
  %v21 = vld [vmem:[%s0] sm:$0xf]
  %v22 = vld [vmem:[%s0 + $0x4] sm:$0xf]
  %v23 = vld [vmem:[%s0 + $0x8] sm:$0xf]
  %v24 = vld [vmem:[%s0 + $0xc] sm:$0xf]
  %v25 = vld [vmem:[%s0 + $0x10] sm:$0xf]
  %v26 = vld [vmem:[%s0 + $0x14] sm:$0xf]
  %v27 = vld [vmem:[%s0 + $0x18] sm:$0xf]
  %v28 = vld [vmem:[%s0 + $0x1c] sm:$0xf]
  %v29 = vld [vmem:[%s0 + $0x20] sm:$0xf]
  %v30 = vld [vmem:[%s0 + $0x24] sm:$0xf]
  %v31 = vld [vmem:[%s0 + $0x28] sm:$0xf]
  %v32 = vld [vmem:[%s0 + $0x2c] sm:$0xf]
  %v33 = vld [vmem:[%s0 + $0x30] sm:$0xf]
  %v34 = vld [vmem:[%s0 + $0x34] sm:$0xf]
  %v35 = vld [vmem:[%s0 + $0x38] sm:$0xf]
  %v36 = vld [vmem:[%s0 + $0x3c] sm:$0xf]
  %v37 = vld [vmem:[%s1] sm:$0xf]
  %v38 = vld [vmem:[%s1 + $0x4] sm:$0xf]
  %v39 = vld [vmem:[%s1 + $0x8] sm:$0xf]
  %v40 = vld [vmem:[%s1 + $0xc] sm:$0xf]
  %v41 = vld [vmem:[%s1 + $0x10] sm:$0x3]
  %v58 = vunpack.c.l.b16 %v21
  %v59 = vunpack.c.l.b16 %v22
  %v60 = vunpack.c.l.b16 %v23
  %v61 = vunpack.c.l.b16 %v24
  %v62 = vunpack.c.l.b16 %v25
  %v63 = vunpack.c.l.b16 %v26
  %v64 = vunpack.c.l.b16 %v27
  %v65 = vunpack.c.l.b16 %v28
  %v66 = vunpack.c.l.b16 %v29
  %v67 = vunpack.c.l.b16 %v30
  %v68 = vunpack.c.l.b16 %v31
  %v69 = vunpack.c.l.b16 %v32
  %v70 = vunpack.c.l.b16 %v33
  %v71 = vunpack.c.l.b16 %v34
  %v72 = vunpack.c.l.b16 %v35
  %v73 = vunpack.c.l.b16 %v36
  %v74 = vpack.c.b16 %v59, %v58
  %v75 = vpack.c.b16 %v61, %v60
  %v76 = vpack.c.b16 %v63, %v62
  %v77 = vpack.c.b16 %v65, %v64
  %v78 = vpack.c.b16 %v67, %v66
  %v79 = vpack.c.b16 %v69, %v68
  %v80 = vpack.c.b16 %v71, %v70
  %v81 = vpack.c.b16 %v73, %v72
  %v87 = vunpack.c.l.b16 %v37
  %v88 = vunpack.c.l.b16 %v38
  %v89 = vunpack.c.l.b16 %v39
  %v90 = vunpack.c.l.b16 %v40
  %v91 = vunpack.c.l.b16 %v41
  %v92 = vpack.c.b16 %v88, %v87
  %v93 = vpack.c.b16 %v90, %v89
  %v94 = vpack.c.b16 %v91, %v91
  %vm97 = vcmask 293888
  %v99 = vsel %vm97, %v74, 0
  %v102 = vsel %vm97, %v75, 0
  %v105 = vsel %vm97, %v76, 0
  %v108 = vsel %vm97, %v77, 0
  %v111 = vsel %vm97, %v78, 0
  %v114 = vsel %vm97, %v79, 0
  %v117 = vsel %vm97, %v80, 0
  %v120 = vsel %vm97, %v81, 0
  %vm122 = vcmask 1041408
  %v124 = vsel %vm122, %v94, 0
  %126 = vmatprep.subr.bf16.mxu0 0
  %127 = vmatpush1.bf16.msra.mxu0 %v92
  %128 = vmatprep.subr.bf16.mxu0 0
  %129 = vmatpush1.bf16.msra.mxu0 %v93
  %130 = vmatprep.subr.bf16.mxu0 0
  %131 = vmatpush1.bf16.msra.mxu0 %v124
  %132 = vmatprep.subr.bf16.mxu0 0
  %133 = vmatpush1.bf16.msra.mxu0 0
  %134 = vmatprep.subr.bf16.mxu0 0
  %135 = vmatpush1.bf16.msra.mxu0 0
  %136 = vmatprep.subr.bf16.mxu0 0
  %137 = vmatpush1.bf16.msra.mxu0 0
  %138 = vmatprep.subr.bf16.mxu0 0
  %139 = vmatpush1.bf16.msra.mxu0 0
  %140 = vmatprep.subr.bf16.mxu0 0
  %141 = vmatpush1.bf16.msra.mxu0 0
  %142 = vmatprep.subr.bf16.mxu0 0
  %143 = vmatpush1.bf16.msra.mxu0 0
  %144 = vmatprep.subr.bf16.mxu0 0
  %145 = vmatpush1.bf16.msra.mxu0 0
  %146 = vmatprep.subr.bf16.mxu0 0
  %147 = vmatpush1.bf16.msra.mxu0 0
  %148 = vmatprep.subr.bf16.mxu0 0
  %149 = vmatpush1.bf16.msra.mxu0 0
  %150 = vmatprep.subr.bf16.mxu0 0
  %151 = vmatpush1.bf16.msra.mxu0 0
  %152 = vmatprep.subr.bf16.mxu0 0
  %153 = vmatpush1.bf16.msra.mxu0 0
  %154 = vmatprep.subr.bf16.mxu0 0
  %155 = vmatpush1.bf16.msra.mxu0 0
  %156 = vmatprep.subr.bf16.mxu0 0
  %157 = vmatpush1.bf16.msra.mxu0 0
  %158 = vmatprep.mubr.bf16.mxu0 0
  %159 = vmatmul.mubr.bf16.gmra.mrb[0].mxu0 %v99
  %v160 = vpop.f32.mrb[0].mxu0
  %v161 = vadd.f32 0.0, %v160
  %v162 = vpop.f32.mrb[0].mxu0
  %v163 = vpop.f32.mrb[0].mxu0
  %v164 = vadd.f32 0.0, %v163
  %v165 = vpop.f32.mrb[0].mxu0
  %166 = vmatprep.mubr.bf16.mxu0 0
  %167 = vmatmul.mubr.bf16.gmra.mrb[0].mxu0 %v102
  %v168 = vpop.f32.mrb[0].mxu0
  %v169 = vadd.f32 0.0, %v168
  %v170 = vpop.f32.mrb[0].mxu0
  %v171 = vpop.f32.mrb[0].mxu0
  %v172 = vadd.f32 0.0, %v171
  %v173 = vpop.f32.mrb[0].mxu0
  %174 = vmatprep.mubr.bf16.mxu0 0
  %175 = vmatmul.mubr.bf16.gmra.mrb[0].mxu0 %v105
  %v176 = vpop.f32.mrb[0].mxu0
  %v177 = vadd.f32 0.0, %v176
  %v178 = vpop.f32.mrb[0].mxu0
  %v179 = vpop.f32.mrb[0].mxu0
  %v180 = vadd.f32 0.0, %v179
  %v181 = vpop.f32.mrb[0].mxu0
  %182 = vmatprep.mubr.bf16.mxu0 0
  %183 = vmatmul.mubr.bf16.gmra.mrb[0].mxu0 %v108
  %v184 = vpop.f32.mrb[0].mxu0
  %v185 = vadd.f32 0.0, %v184
  %v186 = vpop.f32.mrb[0].mxu0
  %v187 = vpop.f32.mrb[0].mxu0
  %v188 = vadd.f32 0.0, %v187
  %v189 = vpop.f32.mrb[0].mxu0
  %190 = vmatprep.mubr.bf16.mxu0 0
  %191 = vmatmul.mubr.bf16.gmra.mrb[0].mxu0 %v111
  %v192 = vpop.f32.mrb[0].mxu0
  %v193 = vadd.f32 0.0, %v192
  %v194 = vpop.f32.mrb[0].mxu0
  %v195 = vpop.f32.mrb[0].mxu0
  %v196 = vadd.f32 0.0, %v195
  %v197 = vpop.f32.mrb[0].mxu0
  %198 = vmatprep.mubr.bf16.mxu0 0
  %199 = vmatmul.mubr.bf16.gmra.mrb[0].mxu0 %v114
  %v200 = vpop.f32.mrb[0].mxu0
  %v201 = vadd.f32 0.0, %v200
  %v202 = vpop.f32.mrb[0].mxu0
  %v203 = vpop.f32.mrb[0].mxu0
  %v204 = vadd.f32 0.0, %v203
  %v205 = vpop.f32.mrb[0].mxu0
  %206 = vmatprep.mubr.bf16.mxu0 0
  %207 = vmatmul.mubr.bf16.gmra.mrb[0].mxu0 %v117
  %v208 = vpop.f32.mrb[0].mxu0
  %v209 = vadd.f32 0.0, %v208
  %v210 = vpop.f32.mrb[0].mxu0
  %v211 = vpop.f32.mrb[0].mxu0
  %v212 = vadd.f32 0.0, %v211
  %v213 = vpop.f32.mrb[0].mxu0
  %214 = vmatprep.mubr.bf16.mxu0 0
  %215 = vmatmul.mubr.bf16.gmra.mrb[0].mxu0 %v120
  %v216 = vpop.f32.mrb[0].mxu0
  %v217 = vadd.f32 0.0, %v216
  %v218 = vpop.f32.mrb[0].mxu0
  %v219 = vpop.f32.mrb[0].mxu0
  %v220 = vadd.f32 0.0, %v219
  %v221 = vpop.f32.mrb[0].mxu0
  %222 = vdwg.mxu0
  %vm223 = vcmask 64512
  %224 = vst.msk [vmem:[%s4] sm:$0xff] %vm223, %v161
  %225 = vst.msk [vmem:[%s4 + $0x8] sm:$0xff] %vm223, %v164
  %226 = vst.msk [vmem:[%s4 + $0x10] sm:$0xff] %vm223, %v169
  %227 = vst.msk [vmem:[%s4 + $0x18] sm:$0xff] %vm223, %v172
  %228 = vst.msk [vmem:[%s4 + $0x20] sm:$0xff] %vm223, %v177
  %229 = vst.msk [vmem:[%s4 + $0x28] sm:$0xff] %vm223, %v180
  %230 = vst.msk [vmem:[%s4 + $0x30] sm:$0xff] %vm223, %v185
  %231 = vst.msk [vmem:[%s4 + $0x38] sm:$0xff] %vm223, %v188
  %232 = vst.msk [vmem:[%s4 + $0x40] sm:$0xff] %vm223, %v193
  %233 = vst.msk [vmem:[%s4 + $0x48] sm:$0xff] %vm223, %v196
  %234 = vst.msk [vmem:[%s4 + $0x50] sm:$0xff] %vm223, %v201
  %235 = vst.msk [vmem:[%s4 + $0x58] sm:$0xff] %vm223, %v204
  %236 = vst.msk [vmem:[%s4 + $0x60] sm:$0xff] %vm223, %v209
  %237 = vst.msk [vmem:[%s4 + $0x68] sm:$0xff] %vm223, %v212
  %238 = vst.msk [vmem:[%s4 + $0x70] sm:$0xff] %vm223, %v217
  %239 = vst.msk [vmem:[%s4 + $0x78] sm:$0xff] %vm223, %v220
  %v240 = vsel %vm223, %v161, 0.0
  %v241 = vsel %vm223, %v164, 0.0
  %v242 = vadd.f32 %v240, %v241
  %v243 = vsel %vm223, %v169, 0.0
  %v244 = vadd.f32 %v242, %v243
  %v245 = vsel %vm223, %v172, 0.0
  %v246 = vadd.f32 %v244, %v245
  %v247 = vsel %vm223, %v177, 0.0
  %v248 = vadd.f32 %v246, %v247
  %v249 = vsel %vm223, %v180, 0.0
  %v250 = vadd.f32 %v248, %v249
  %v251 = vsel %vm223, %v185, 0.0
  %v252 = vadd.f32 %v250, %v251
  %v253 = vsel %vm223, %v188, 0.0
  %v254 = vadd.f32 %v252, %v253
  %v255 = vsel %vm223, %v193, 0.0
  %v256 = vadd.f32 %v254, %v255
  %v257 = vsel %vm223, %v196, 0.0
  %v258 = vadd.f32 %v256, %v257
  %v259 = vsel %vm223, %v201, 0.0
  %v260 = vadd.f32 %v258, %v259
  %v261 = vsel %vm223, %v204, 0.0
  %v262 = vadd.f32 %v260, %v261
  %v263 = vsel %vm223, %v209, 0.0
  %v264 = vadd.f32 %v262, %v263
  %v265 = vsel %vm223, %v212, 0.0
  %v266 = vadd.f32 %v264, %v265
  %v267 = vsel %vm223, %v217, 0.0
  %v268 = vadd.f32 %v266, %v267
  %v269 = vsel %vm223, %v220, 0.0
  %v270 = vadd.f32 %v268, %v269
  %v271 = vrot.slane %v270, 4
  %v272 = vadd.f32 %v270, %v271
  %v273 = vrot.slane %v272, 2
  %v274 = vadd.f32 %v272, %v273
  %v275 = vrot.slane %v274, 1
  %v276 = vadd.f32 %v274, %v275
  %v277 = vmul.f32 %v161, %v161
  %v278 = vmul.f32 %v164, %v164
  %v279 = vmul.f32 %v169, %v169
  %v280 = vmul.f32 %v172, %v172
  %v281 = vmul.f32 %v177, %v177
  %v282 = vmul.f32 %v180, %v180
  %v283 = vmul.f32 %v185, %v185
  %v284 = vmul.f32 %v188, %v188
  %v285 = vmul.f32 %v193, %v193
  %v286 = vmul.f32 %v196, %v196
  %v287 = vmul.f32 %v201, %v201
  %v288 = vmul.f32 %v204, %v204
  %v289 = vmul.f32 %v209, %v209
  %v290 = vmul.f32 %v212, %v212
  %v291 = vmul.f32 %v217, %v217
  %v292 = vmul.f32 %v220, %v220
  %v293 = vsel %vm223, %v277, 0.0
  %v294 = vsel %vm223, %v278, 0.0
  %v295 = vadd.f32 %v293, %v294
  %v296 = vsel %vm223, %v279, 0.0
  %v297 = vadd.f32 %v295, %v296
  %v298 = vsel %vm223, %v280, 0.0
  %v299 = vadd.f32 %v297, %v298
  %v300 = vsel %vm223, %v281, 0.0
  %v301 = vadd.f32 %v299, %v300
  %v302 = vsel %vm223, %v282, 0.0
  %v303 = vadd.f32 %v301, %v302
  %v304 = vsel %vm223, %v283, 0.0
  %v305 = vadd.f32 %v303, %v304
  %v306 = vsel %vm223, %v284, 0.0
  %v307 = vadd.f32 %v305, %v306
  %v308 = vsel %vm223, %v285, 0.0
  %v309 = vadd.f32 %v307, %v308
  %v310 = vsel %vm223, %v286, 0.0
  %v311 = vadd.f32 %v309, %v310
  %v312 = vsel %vm223, %v287, 0.0
  %v313 = vadd.f32 %v311, %v312
  %v314 = vsel %vm223, %v288, 0.0
  %v315 = vadd.f32 %v313, %v314
  %v316 = vsel %vm223, %v289, 0.0
  %v317 = vadd.f32 %v315, %v316
  %v318 = vsel %vm223, %v290, 0.0
  %v319 = vadd.f32 %v317, %v318
  %v320 = vsel %vm223, %v291, 0.0
  %v321 = vadd.f32 %v319, %v320
  %v322 = vsel %vm223, %v292, 0.0
  %v323 = vadd.f32 %v321, %v322
  %v324 = vrot.slane %v323, 4
  %v325 = vadd.f32 %v323, %v324
  %v326 = vrot.slane %v325, 2
  %v327 = vadd.f32 %v325, %v326
  %v328 = vrot.slane %v327, 1
  %v329 = vadd.f32 %v327, %v328
  %vm330 = vcmask 1040384
  %v331 = vsel %vm330, %v276, %v329
  %vm332 = vcmask 58368
  %333 = vst.msk [vmem:[%s5] sm:$0x3] %vm332, %v331
  %v334 = vld [vmem:[%s2] sm:$0xf]
  %v335 = vld [vmem:[%s2 + $0x4] sm:$0xf]
  %v336 = vld [vmem:[%s2 + $0x8] sm:$0xf]
  %v337 = vld [vmem:[%s2 + $0xc] sm:$0xf]
  %v338 = vld [vmem:[%s2 + $0x10] sm:$0xf]
  %v339 = vld [vmem:[%s2 + $0x14] sm:$0xf]
  %v340 = vld [vmem:[%s2 + $0x18] sm:$0xf]
  %v341 = vld [vmem:[%s2 + $0x1c] sm:$0xf]
  %v342 = vld [vmem:[%s2 + $0x20] sm:$0xf]
  %v343 = vld [vmem:[%s2 + $0x24] sm:$0xf]
  %v344 = vld [vmem:[%s2 + $0x28] sm:$0xf]
  %v345 = vld [vmem:[%s2 + $0x2c] sm:$0xf]
  %v346 = vld [vmem:[%s2 + $0x30] sm:$0xf]
  %v347 = vld [vmem:[%s2 + $0x34] sm:$0xf]
  %v348 = vld [vmem:[%s2 + $0x38] sm:$0xf]
  %v349 = vld [vmem:[%s2 + $0x3c] sm:$0xf]
  %v350 = vld [vmem:[%s3] sm:$0x3]
  %v367 = vunpack.c.l.b16 %v334
  %v368 = vunpack.c.l.b16 %v335
  %v369 = vunpack.c.l.b16 %v336
  %v370 = vunpack.c.l.b16 %v337
  %v371 = vunpack.c.l.b16 %v338
  %v372 = vunpack.c.l.b16 %v339
  %v373 = vunpack.c.l.b16 %v340
  %v374 = vunpack.c.l.b16 %v341
  %v375 = vunpack.c.l.b16 %v342
  %v376 = vunpack.c.l.b16 %v343
  %v377 = vunpack.c.l.b16 %v344
  %v378 = vunpack.c.l.b16 %v345
  %v379 = vunpack.c.l.b16 %v346
  %v380 = vunpack.c.l.b16 %v347
  %v381 = vunpack.c.l.b16 %v348
  %v382 = vunpack.c.l.b16 %v349
  %v383 = vpack.c.b16 %v368, %v367
  %v384 = vpack.c.b16 %v370, %v369
  %v385 = vpack.c.b16 %v372, %v371
  %v386 = vpack.c.b16 %v374, %v373
  %v387 = vpack.c.b16 %v376, %v375
  %v388 = vpack.c.b16 %v378, %v377
  %v389 = vpack.c.b16 %v380, %v379
  %v390 = vpack.c.b16 %v382, %v381
  %vm391 = vcmask 31744
  %v393 = vsel %vm391, %v383, 0
  %v396 = vsel %vm391, %v384, 0
  %v399 = vsel %vm391, %v385, 0
  %v402 = vsel %vm391, %v386, 0
  %v405 = vsel %vm391, %v387, 0
  %v408 = vsel %vm391, %v388, 0
  %v411 = vsel %vm391, %v389, 0
  %v414 = vsel %vm391, %v390, 0
  %v417 = vsel %vm122, %v350, 0
  %419 = vmatprep.subr.bf16.mxu0 0
  %420 = vmatpush1.bf16.msra.mxu0 %v417
  %421 = vmatprep.subr.bf16.mxu0 0
  %422 = vmatpush1.bf16.msra.mxu0 0
  %423 = vmatprep.subr.bf16.mxu0 0
  %424 = vmatpush1.bf16.msra.mxu0 0
  %425 = vmatprep.subr.bf16.mxu0 0
  %426 = vmatpush1.bf16.msra.mxu0 0
  %427 = vmatprep.subr.bf16.mxu0 0
  %428 = vmatpush1.bf16.msra.mxu0 0
  %429 = vmatprep.subr.bf16.mxu0 0
  %430 = vmatpush1.bf16.msra.mxu0 0
  %431 = vmatprep.subr.bf16.mxu0 0
  %432 = vmatpush1.bf16.msra.mxu0 0
  %433 = vmatprep.subr.bf16.mxu0 0
  %434 = vmatpush1.bf16.msra.mxu0 0
  %435 = vmatprep.subr.bf16.mxu0 0
  %436 = vmatpush1.bf16.msra.mxu0 0
  %437 = vmatprep.subr.bf16.mxu0 0
  %438 = vmatpush1.bf16.msra.mxu0 0
  %439 = vmatprep.subr.bf16.mxu0 0
  %440 = vmatpush1.bf16.msra.mxu0 0
  %441 = vmatprep.subr.bf16.mxu0 0
  %442 = vmatpush1.bf16.msra.mxu0 0
  %443 = vmatprep.subr.bf16.mxu0 0
  %444 = vmatpush1.bf16.msra.mxu0 0
  %445 = vmatprep.subr.bf16.mxu0 0
  %446 = vmatpush1.bf16.msra.mxu0 0
  %447 = vmatprep.subr.bf16.mxu0 0
  %448 = vmatpush1.bf16.msra.mxu0 0
  %449 = vmatprep.subr.bf16.mxu0 0
  %450 = vmatpush1.bf16.msra.mxu0 0
  %451 = vmatprep.mubr.bf16.mxu0 0
  %452 = vmatmul.mubr.bf16.gmra.mrb[0].mxu0 %v393
  %v453 = vpop.f32.mrb[0].mxu0
  %v454 = vadd.f32 0.0, %v453
  %v455 = vpop.f32.mrb[0].mxu0
  %v456 = vpop.f32.mrb[0].mxu0
  %v457 = vadd.f32 0.0, %v456
  %v458 = vpop.f32.mrb[0].mxu0
  %459 = vmatprep.mubr.bf16.mxu0 0
  %460 = vmatmul.mubr.bf16.gmra.mrb[0].mxu0 %v396
  %v461 = vpop.f32.mrb[0].mxu0
  %v462 = vadd.f32 0.0, %v461
  %v463 = vpop.f32.mrb[0].mxu0
  %v464 = vpop.f32.mrb[0].mxu0
  %v465 = vadd.f32 0.0, %v464
  %v466 = vpop.f32.mrb[0].mxu0
  %467 = vmatprep.mubr.bf16.mxu0 0
  %468 = vmatmul.mubr.bf16.gmra.mrb[0].mxu0 %v399
  %v469 = vpop.f32.mrb[0].mxu0
  %v470 = vadd.f32 0.0, %v469
  %v471 = vpop.f32.mrb[0].mxu0
  %v472 = vpop.f32.mrb[0].mxu0
  %v473 = vadd.f32 0.0, %v472
  %v474 = vpop.f32.mrb[0].mxu0
  %475 = vmatprep.mubr.bf16.mxu0 0
  %476 = vmatmul.mubr.bf16.gmra.mrb[0].mxu0 %v402
  %v477 = vpop.f32.mrb[0].mxu0
  %v478 = vadd.f32 0.0, %v477
  %v479 = vpop.f32.mrb[0].mxu0
  %v480 = vpop.f32.mrb[0].mxu0
  %v481 = vadd.f32 0.0, %v480
  %v482 = vpop.f32.mrb[0].mxu0
  %483 = vmatprep.mubr.bf16.mxu0 0
  %484 = vmatmul.mubr.bf16.gmra.mrb[0].mxu0 %v405
  %v485 = vpop.f32.mrb[0].mxu0
  %v486 = vadd.f32 0.0, %v485
  %v487 = vpop.f32.mrb[0].mxu0
  %v488 = vpop.f32.mrb[0].mxu0
  %v489 = vadd.f32 0.0, %v488
  %v490 = vpop.f32.mrb[0].mxu0
  %491 = vmatprep.mubr.bf16.mxu0 0
  %492 = vmatmul.mubr.bf16.gmra.mrb[0].mxu0 %v408
  %v493 = vpop.f32.mrb[0].mxu0
  %v494 = vadd.f32 0.0, %v493
  %v495 = vpop.f32.mrb[0].mxu0
  %v496 = vpop.f32.mrb[0].mxu0
  %v497 = vadd.f32 0.0, %v496
  %v498 = vpop.f32.mrb[0].mxu0
  %499 = vmatprep.mubr.bf16.mxu0 0
  %500 = vmatmul.mubr.bf16.gmra.mrb[0].mxu0 %v411
  %v501 = vpop.f32.mrb[0].mxu0
  %v502 = vadd.f32 0.0, %v501
  %v503 = vpop.f32.mrb[0].mxu0
  %v504 = vpop.f32.mrb[0].mxu0
  %v505 = vadd.f32 0.0, %v504
  %v506 = vpop.f32.mrb[0].mxu0
  %507 = vmatprep.mubr.bf16.mxu0 0
  %508 = vmatmul.mubr.bf16.gmra.mrb[0].mxu0 %v414
  %v509 = vpop.f32.mrb[0].mxu0
  %v510 = vadd.f32 0.0, %v509
  %v511 = vpop.f32.mrb[0].mxu0
  %v512 = vpop.f32.mrb[0].mxu0
  %v513 = vadd.f32 0.0, %v512
  %v514 = vpop.f32.mrb[0].mxu0
  %515 = vdwg.mxu0
  %516 = vst.msk [vmem:[%s6] sm:$0xff] %vm223, %v454
  %517 = vst.msk [vmem:[%s6 + $0x8] sm:$0xff] %vm223, %v457
  %518 = vst.msk [vmem:[%s6 + $0x10] sm:$0xff] %vm223, %v462
  %519 = vst.msk [vmem:[%s6 + $0x18] sm:$0xff] %vm223, %v465
  %520 = vst.msk [vmem:[%s6 + $0x20] sm:$0xff] %vm223, %v470
  %521 = vst.msk [vmem:[%s6 + $0x28] sm:$0xff] %vm223, %v473
  %522 = vst.msk [vmem:[%s6 + $0x30] sm:$0xff] %vm223, %v478
  %523 = vst.msk [vmem:[%s6 + $0x38] sm:$0xff] %vm223, %v481
  %524 = vst.msk [vmem:[%s6 + $0x40] sm:$0xff] %vm223, %v486
  %525 = vst.msk [vmem:[%s6 + $0x48] sm:$0xff] %vm223, %v489
  %526 = vst.msk [vmem:[%s6 + $0x50] sm:$0xff] %vm223, %v494
  %527 = vst.msk [vmem:[%s6 + $0x58] sm:$0xff] %vm223, %v497
  %528 = vst.msk [vmem:[%s6 + $0x60] sm:$0xff] %vm223, %v502
  %529 = vst.msk [vmem:[%s6 + $0x68] sm:$0xff] %vm223, %v505
  %530 = vst.msk [vmem:[%s6 + $0x70] sm:$0xff] %vm223, %v510
  %531 = vst.msk [vmem:[%s6 + $0x78] sm:$0xff] %vm223, %v513
  // Predicated region
  $region18: #{_lambda_.8} parent=0 // pred_check
    _
  $region19: #{_lambda_.8} parent=0 // pred_check_branch
    %533 = sbr.rel (0) target = $region21
  $region20: #{_lambda_.8} parent=0 // pred_region
    _
  $region21: #{_lambda_.8} parent=0 // pred_fallthru
    _
  // Predicated region
  $region22: #{_lambda_.8} parent=0 // pred_check
    _
  $region23: #{_lambda_.8} parent=0 // pred_check_branch
    %535 = sbr.rel (0) target = $region25
  $region24: #{_lambda_.8} parent=0 // pred_region
    _
  $region25: #{_lambda_.8} parent=0 // pred_fallthru
    _
  // Predicated region
  $region26: #{_lambda_.8} parent=0 // pred_check
    _
  $region27: #{_lambda_.8} parent=0 // pred_check_branch
    %537 = sbr.rel (0) target = $region29
  $region28: #{_lambda_.8} parent=0 // pred_region
    _
  $region29: #{_lambda_.8} parent=0 // pred_fallthru
    _
  // Predicated region
  $region30: #{_lambda_.8} parent=0 // pred_check
    _
  $region31: #{_lambda_.8} parent=0 // pred_check_branch
    %539 = sbr.rel (0) target = $region33
  $region32: #{_lambda_.8} parent=0 // pred_region
    _
  $region33: #{_lambda_.8} parent=0 // pred_fallthru
    _
  // Predicated region
  $region34: #{_lambda_.8} parent=0 // pred_check
    _
  $region35: #{_lambda_.8} parent=0 // pred_check_branch
    %541 = sbr.rel (0) target = $region37
  $region36: #{_lambda_.8} parent=0 // pred_region
    _
  $region37: #{_lambda_.8} parent=0 // pred_fallthru
    _
  // Predicated region
  $region38: #{_lambda_.8} parent=0 // pred_check
    _
  $region39: #{_lambda_.8} parent=0 // pred_check_branch
    %543 = sbr.rel (0) target = $region41
  $region40: #{_lambda_.8} parent=0 // pred_region
    _
  $region41: #{_lambda_.8} parent=0 // pred_fallthru
    _

// kernel: _lambda_.11
$region0: #{_lambda_.11}
  #allocation0 [shape = 'u32[]', space=smem, size = 0x4, offset = 0x4, fixed_abs, tag = 'smem constant byte address 0x4 - core index']
  #allocation1 [shape = 'u32[144,128]{1,0:T(1,128)}', space=vmem, size = 0x12000, scoped, tag = 'internal scratch']
  %s0 = inlined_call_operand.vmem [shape: f32[8,128], index: 0, kind: input, shape index: {}]
  %s1 = inlined_call_operand.vmem [shape: f32[1,128], index: 1, kind: input, shape index: {}]
  %s2 = inlined_call_operand.vmem [shape: f32[1,128], index: 2, kind: input, shape index: {}]
  %s3 = inlined_call_operand.vmem [shape: f32[8,128], index: 3, kind: input, shape index: {}]
  %s4 = inlined_call_operand.vmem [shape: f32[8,128], index: 4, kind: output, shape index: {}]
  %s5 = sld [smem:[#allocation0]]
  $region26: #{_lambda_.11} parent=0
    _
  %s7 = ssub.s32 1, %s5
  %s8 = scalar_select 0, %s7, %s5
  // Predicated region
  $region2: #{_lambda_.11} parent=0 // pred_check
    _
  $region3: #{_lambda_.11} parent=0 // pred_check_branch
    %10 = sbr.rel (0) target = $region5
  $region4: #{_lambda_.11} parent=0 // pred_region
    _
  $region5: #{_lambda_.11} parent=0 // pred_fallthru
    _
  // Predicated region
  $region6: #{_lambda_.11} parent=0 // pred_check
    _
  $region7: #{_lambda_.11} parent=0 // pred_check_branch
    %12 = sbr.rel (0) target = $region9
  $region8: #{_lambda_.11} parent=0 // pred_region
    _
  $region9: #{_lambda_.11} parent=0 // pred_fallthru
    _
  // Predicated region
  $region10: #{_lambda_.11} parent=0 // pred_check
    _
  $region11: #{_lambda_.11} parent=0 // pred_check_branch
    %14 = sbr.rel (0) target = $region13
  $region12: #{_lambda_.11} parent=0 // pred_region
    _
  $region13: #{_lambda_.11} parent=0 // pred_fallthru
    _
  // Predicated region
  $region14: #{_lambda_.11} parent=0 // pred_check
    _
  $region15: #{_lambda_.11} parent=0 // pred_check_branch
    %16 = sbr.rel (0) target = $region17
  $region16: #{_lambda_.11} parent=0 // pred_region
    _
  $region17: #{_lambda_.11} parent=0 // pred_fallthru
    _
  %v17 = vld [vmem:[%s0] sm:$0xff]
  %v18 = vld [vmem:[%s1] sm:$0x1]
  %v20 = vlaneseq
  %v21 = vshrl.u32 %v20, 7
  %v22 = vsub.s32 0, %v21
  %v23 = vrot.slane %v18, %v22
  %v25 = vmul.f32 %v17, %v23
  %v26 = vld [vmem:[%s2] sm:$0x1]
  %v28 = vlaneseq
  %v29 = vshrl.u32 %v28, 7
  %v30 = vsub.s32 0, %v29
  %v31 = vrot.slane %v26, %v30
  %v33 = vadd.f32 %v25, %v31
  %v34 = vld [vmem:[%s3] sm:$0xff]
  %v35 = vadd.f32 %v33, %v34
  %v36 = vmax.f32 %v35, 0.0
  %37 = vst [vmem:[%s4] sm:$0xff] %v36
  // Predicated region
  $region18: #{_lambda_.11} parent=0 // pred_check
    _
  $region19: #{_lambda_.11} parent=0 // pred_check_branch
    %39 = sbr.rel (0) target = $region21
  $region20: #{_lambda_.11} parent=0 // pred_region
    _
  $region21: #{_lambda_.11} parent=0 // pred_fallthru
    _
  // Predicated region
  $region22: #{_lambda_.11} parent=0 // pred_check
    _
  $region23: #{_lambda_.11} parent=0 // pred_check_branch
    %41 = sbr.rel (0) target = $region25
  $region24: #{_lambda_.11} parent=0 // pred_region
    _
  $region25: #{_lambda_.11} parent=0 // pred_fallthru
    _

// kernel: _lambda_.10
$region0: #{_lambda_.10}
  #allocation0 [shape = 'u32[]', space=smem, size = 0x4, offset = 0x4, fixed_abs, tag = 'smem constant byte address 0x4 - core index']
  #allocation1 [shape = 'u32[144,128]{1,0:T(1,128)}', space=vmem, size = 0x12000, scoped, tag = 'internal scratch']
  %s0 = inlined_call_operand.vmem [shape: bf16[128,72], index: 0, kind: input, shape index: {}]
  %s1 = inlined_call_operand.vmem [shape: bf16[72,8], index: 1, kind: input, shape index: {}]
  %s2 = inlined_call_operand.vmem [shape: f32[128,8], index: 2, kind: output, shape index: {0}]
  %s3 = inlined_call_operand.vmem [shape: f32[1,2,8], index: 3, kind: output, shape index: {1}]
  %4 = xla_tuple %s2, %s3
  %s5 = sld [smem:[#allocation0]]
  $region26: #{_lambda_.10} parent=0
    _
  %s7 = ssub.s32 1, %s5
  %s8 = scalar_select 0, %s7, %s5
  // Predicated region
  $region2: #{_lambda_.10} parent=0 // pred_check
    _
  $region3: #{_lambda_.10} parent=0 // pred_check_branch
    %10 = sbr.rel (0) target = $region5
  $region4: #{_lambda_.10} parent=0 // pred_region
    _
  $region5: #{_lambda_.10} parent=0 // pred_fallthru
    _
  // Predicated region
  $region6: #{_lambda_.10} parent=0 // pred_check
    _
  $region7: #{_lambda_.10} parent=0 // pred_check_branch
    %12 = sbr.rel (0) target = $region9
  $region8: #{_lambda_.10} parent=0 // pred_region
    _
  $region9: #{_lambda_.10} parent=0 // pred_fallthru
    _
  %v14 = vld [vmem:[%s0] sm:$0xf]
  %v15 = vld [vmem:[%s0 + $0x4] sm:$0xf]
  %v16 = vld [vmem:[%s0 + $0x8] sm:$0xf]
  %v17 = vld [vmem:[%s0 + $0xc] sm:$0xf]
  %v18 = vld [vmem:[%s0 + $0x10] sm:$0xf]
  %v19 = vld [vmem:[%s0 + $0x14] sm:$0xf]
  %v20 = vld [vmem:[%s0 + $0x18] sm:$0xf]
  %v21 = vld [vmem:[%s0 + $0x1c] sm:$0xf]
  %v22 = vld [vmem:[%s0 + $0x20] sm:$0xf]
  %v23 = vld [vmem:[%s0 + $0x24] sm:$0xf]
  %v24 = vld [vmem:[%s0 + $0x28] sm:$0xf]
  %v25 = vld [vmem:[%s0 + $0x2c] sm:$0xf]
  %v26 = vld [vmem:[%s0 + $0x30] sm:$0xf]
  %v27 = vld [vmem:[%s0 + $0x34] sm:$0xf]
  %v28 = vld [vmem:[%s0 + $0x38] sm:$0xf]
  %v29 = vld [vmem:[%s0 + $0x3c] sm:$0xf]
  %v30 = vld [vmem:[%s1] sm:$0xf]
  %v31 = vld [vmem:[%s1 + $0x4] sm:$0xf]
  %v32 = vld [vmem:[%s1 + $0x8] sm:$0xf]
  %v33 = vld [vmem:[%s1 + $0xc] sm:$0xf]
  %v34 = vld [vmem:[%s1 + $0x10] sm:$0xf]
  %v35 = vld [vmem:[%s1 + $0x14] sm:$0xf]
  %v36 = vld [vmem:[%s1 + $0x18] sm:$0xf]
  %v37 = vld [vmem:[%s1 + $0x1c] sm:$0xf]
  %v38 = vld [vmem:[%s1 + $0x20] sm:$0xf]
  %v55 = vunpack.c.l.b16 %v14
  %v56 = vunpack.c.l.b16 %v15
  %v57 = vunpack.c.l.b16 %v16
  %v58 = vunpack.c.l.b16 %v17
  %v59 = vunpack.c.l.b16 %v18
  %v60 = vunpack.c.l.b16 %v19
  %v61 = vunpack.c.l.b16 %v20
  %v62 = vunpack.c.l.b16 %v21
  %v63 = vunpack.c.l.b16 %v22
  %v64 = vunpack.c.l.b16 %v23
  %v65 = vunpack.c.l.b16 %v24
  %v66 = vunpack.c.l.b16 %v25
  %v67 = vunpack.c.l.b16 %v26
  %v68 = vunpack.c.l.b16 %v27
  %v69 = vunpack.c.l.b16 %v28
  %v70 = vunpack.c.l.b16 %v29
  %v71 = vpack.c.b16 %v56, %v55
  %v72 = vpack.c.b16 %v58, %v57
  %v73 = vpack.c.b16 %v60, %v59
  %v74 = vpack.c.b16 %v62, %v61
  %v75 = vpack.c.b16 %v64, %v63
  %v76 = vpack.c.b16 %v66, %v65
  %v77 = vpack.c.b16 %v68, %v67
  %v78 = vpack.c.b16 %v70, %v69
  %v88 = vunpack.c.l.b16 %v30
  %v89 = vunpack.c.l.b16 %v31
  %v90 = vunpack.c.l.b16 %v32
  %v91 = vunpack.c.l.b16 %v33
  %v92 = vunpack.c.l.b16 %v34
  %v93 = vunpack.c.l.b16 %v35
  %v94 = vunpack.c.l.b16 %v36
  %v95 = vunpack.c.l.b16 %v37
  %v96 = vunpack.c.l.b16 %v38
  %v97 = vpack.c.b16 %v89, %v88
  %v98 = vpack.c.b16 %v91, %v90
  %v99 = vpack.c.b16 %v93, %v92
  %v100 = vpack.c.b16 %v95, %v94
  %v101 = vpack.c.b16 %v96, %v96
  %vm106 = vcmask 588800
  %v108 = vsel %vm106, %v71, 0
  %v111 = vsel %vm106, %v72, 0
  %v114 = vsel %vm106, %v73, 0
  %v117 = vsel %vm106, %v74, 0
  %v120 = vsel %vm106, %v75, 0
  %v123 = vsel %vm106, %v76, 0
  %v126 = vsel %vm106, %v77, 0
  %v129 = vsel %vm106, %v78, 0
  %vm131 = vcmask 1043456
  %v133 = vsel %vm131, %v101, 0
  %135 = vmatprep.subr.bf16.mxu0 0
  %136 = vmatpush1.bf16.msra.mxu0 %v97
  %137 = vmatprep.subr.bf16.mxu0 0
  %138 = vmatpush1.bf16.msra.mxu0 %v98
  %139 = vmatprep.subr.bf16.mxu0 0
  %140 = vmatpush1.bf16.msra.mxu0 %v99
  %141 = vmatprep.subr.bf16.mxu0 0
  %142 = vmatpush1.bf16.msra.mxu0 %v100
  %143 = vmatprep.subr.bf16.mxu0 0
  %144 = vmatpush1.bf16.msra.mxu0 %v133
  %145 = vmatprep.subr.bf16.mxu0 0
  %146 = vmatpush1.bf16.msra.mxu0 0
  %147 = vmatprep.subr.bf16.mxu0 0
  %148 = vmatpush1.bf16.msra.mxu0 0
  %149 = vmatprep.subr.bf16.mxu0 0
  %150 = vmatpush1.bf16.msra.mxu0 0
  %151 = vmatprep.subr.bf16.mxu0 0
  %152 = vmatpush1.bf16.msra.mxu0 0
  %153 = vmatprep.subr.bf16.mxu0 0
  %154 = vmatpush1.bf16.msra.mxu0 0
  %155 = vmatprep.subr.bf16.mxu0 0
  %156 = vmatpush1.bf16.msra.mxu0 0
  %157 = vmatprep.subr.bf16.mxu0 0
  %158 = vmatpush1.bf16.msra.mxu0 0
  %159 = vmatprep.subr.bf16.mxu0 0
  %160 = vmatpush1.bf16.msra.mxu0 0
  %161 = vmatprep.subr.bf16.mxu0 0
  %162 = vmatpush1.bf16.msra.mxu0 0
  %163 = vmatprep.subr.bf16.mxu0 0
  %164 = vmatpush1.bf16.msra.mxu0 0
  %165 = vmatprep.subr.bf16.mxu0 0
  %166 = vmatpush1.bf16.msra.mxu0 0
  %167 = vmatprep.mubr.bf16.mxu0 0
  %168 = vmatmul.mubr.bf16.gmra.mrb[0].mxu0 %v108
  %v169 = vpop.f32.mrb[0].mxu0
  %v170 = vadd.f32 0.0, %v169
  %v171 = vpop.f32.mrb[0].mxu0
  %v172 = vpop.f32.mrb[0].mxu0
  %v173 = vadd.f32 0.0, %v172
  %v174 = vpop.f32.mrb[0].mxu0
  %175 = vmatprep.mubr.bf16.mxu0 0
  %176 = vmatmul.mubr.bf16.gmra.mrb[0].mxu0 %v111
  %v177 = vpop.f32.mrb[0].mxu0
  %v178 = vadd.f32 0.0, %v177
  %v179 = vpop.f32.mrb[0].mxu0
  %v180 = vpop.f32.mrb[0].mxu0
  %v181 = vadd.f32 0.0, %v180
  %v182 = vpop.f32.mrb[0].mxu0
  %183 = vmatprep.mubr.bf16.mxu0 0
  %184 = vmatmul.mubr.bf16.gmra.mrb[0].mxu0 %v114
  %v185 = vpop.f32.mrb[0].mxu0
  %v186 = vadd.f32 0.0, %v185
  %v187 = vpop.f32.mrb[0].mxu0
  %v188 = vpop.f32.mrb[0].mxu0
  %v189 = vadd.f32 0.0, %v188
  %v190 = vpop.f32.mrb[0].mxu0
  %191 = vmatprep.mubr.bf16.mxu0 0
  %192 = vmatmul.mubr.bf16.gmra.mrb[0].mxu0 %v117
  %v193 = vpop.f32.mrb[0].mxu0
  %v194 = vadd.f32 0.0, %v193
  %v195 = vpop.f32.mrb[0].mxu0
  %v196 = vpop.f32.mrb[0].mxu0
  %v197 = vadd.f32 0.0, %v196
  %v198 = vpop.f32.mrb[0].mxu0
  %199 = vmatprep.mubr.bf16.mxu0 0
  %200 = vmatmul.mubr.bf16.gmra.mrb[0].mxu0 %v120
  %v201 = vpop.f32.mrb[0].mxu0
  %v202 = vadd.f32 0.0, %v201
  %v203 = vpop.f32.mrb[0].mxu0
  %v204 = vpop.f32.mrb[0].mxu0
  %v205 = vadd.f32 0.0, %v204
  %v206 = vpop.f32.mrb[0].mxu0
  %207 = vmatprep.mubr.bf16.mxu0 0
  %208 = vmatmul.mubr.bf16.gmra.mrb[0].mxu0 %v123
  %v209 = vpop.f32.mrb[0].mxu0
  %v210 = vadd.f32 0.0, %v209
  %v211 = vpop.f32.mrb[0].mxu0
  %v212 = vpop.f32.mrb[0].mxu0
  %v213 = vadd.f32 0.0, %v212
  %v214 = vpop.f32.mrb[0].mxu0
  %215 = vmatprep.mubr.bf16.mxu0 0
  %216 = vmatmul.mubr.bf16.gmra.mrb[0].mxu0 %v126
  %v217 = vpop.f32.mrb[0].mxu0
  %v218 = vadd.f32 0.0, %v217
  %v219 = vpop.f32.mrb[0].mxu0
  %v220 = vpop.f32.mrb[0].mxu0
  %v221 = vadd.f32 0.0, %v220
  %v222 = vpop.f32.mrb[0].mxu0
  %223 = vmatprep.mubr.bf16.mxu0 0
  %224 = vmatmul.mubr.bf16.gmra.mrb[0].mxu0 %v129
  %v225 = vpop.f32.mrb[0].mxu0
  %v226 = vadd.f32 0.0, %v225
  %v227 = vpop.f32.mrb[0].mxu0
  %v228 = vpop.f32.mrb[0].mxu0
  %v229 = vadd.f32 0.0, %v228
  %v230 = vpop.f32.mrb[0].mxu0
  %231 = vdwg.mxu0
  %vm232 = vcmask 64512
  %233 = vst.msk [vmem:[%s2] sm:$0xff] %vm232, %v170
  %234 = vst.msk [vmem:[%s2 + $0x8] sm:$0xff] %vm232, %v173
  %235 = vst.msk [vmem:[%s2 + $0x10] sm:$0xff] %vm232, %v178
  %236 = vst.msk [vmem:[%s2 + $0x18] sm:$0xff] %vm232, %v181
  %237 = vst.msk [vmem:[%s2 + $0x20] sm:$0xff] %vm232, %v186
  %238 = vst.msk [vmem:[%s2 + $0x28] sm:$0xff] %vm232, %v189
  %239 = vst.msk [vmem:[%s2 + $0x30] sm:$0xff] %vm232, %v194
  %240 = vst.msk [vmem:[%s2 + $0x38] sm:$0xff] %vm232, %v197
  %241 = vst.msk [vmem:[%s2 + $0x40] sm:$0xff] %vm232, %v202
  %242 = vst.msk [vmem:[%s2 + $0x48] sm:$0xff] %vm232, %v205
  %243 = vst.msk [vmem:[%s2 + $0x50] sm:$0xff] %vm232, %v210
  %244 = vst.msk [vmem:[%s2 + $0x58] sm:$0xff] %vm232, %v213
  %245 = vst.msk [vmem:[%s2 + $0x60] sm:$0xff] %vm232, %v218
  %246 = vst.msk [vmem:[%s2 + $0x68] sm:$0xff] %vm232, %v221
  %247 = vst.msk [vmem:[%s2 + $0x70] sm:$0xff] %vm232, %v226
  %248 = vst.msk [vmem:[%s2 + $0x78] sm:$0xff] %vm232, %v229
  %v249 = vsel %vm232, %v170, 0.0
  %v250 = vsel %vm232, %v173, 0.0
  %v251 = vadd.f32 %v249, %v250
  %v252 = vsel %vm232, %v178, 0.0
  %v253 = vadd.f32 %v251, %v252
  %v254 = vsel %vm232, %v181, 0.0
  %v255 = vadd.f32 %v253, %v254
  %v256 = vsel %vm232, %v186, 0.0
  %v257 = vadd.f32 %v255, %v256
  %v258 = vsel %vm232, %v189, 0.0
  %v259 = vadd.f32 %v257, %v258
  %v260 = vsel %vm232, %v194, 0.0
  %v261 = vadd.f32 %v259, %v260
  %v262 = vsel %vm232, %v197, 0.0
  %v263 = vadd.f32 %v261, %v262
  %v264 = vsel %vm232, %v202, 0.0
  %v265 = vadd.f32 %v263, %v264
  %v266 = vsel %vm232, %v205, 0.0
  %v267 = vadd.f32 %v265, %v266
  %v268 = vsel %vm232, %v210, 0.0
  %v269 = vadd.f32 %v267, %v268
  %v270 = vsel %vm232, %v213, 0.0
  %v271 = vadd.f32 %v269, %v270
  %v272 = vsel %vm232, %v218, 0.0
  %v273 = vadd.f32 %v271, %v272
  %v274 = vsel %vm232, %v221, 0.0
  %v275 = vadd.f32 %v273, %v274
  %v276 = vsel %vm232, %v226, 0.0
  %v277 = vadd.f32 %v275, %v276
  %v278 = vsel %vm232, %v229, 0.0
  %v279 = vadd.f32 %v277, %v278
  %v280 = vrot.slane %v279, 4
  %v281 = vadd.f32 %v279, %v280
  %v282 = vrot.slane %v281, 2
  %v283 = vadd.f32 %v281, %v282
  %v284 = vrot.slane %v283, 1
  %v285 = vadd.f32 %v283, %v284
  %v286 = vmul.f32 %v170, %v170
  %v287 = vmul.f32 %v173, %v173
  %v288 = vmul.f32 %v178, %v178
  %v289 = vmul.f32 %v181, %v181
  %v290 = vmul.f32 %v186, %v186
  %v291 = vmul.f32 %v189, %v189
  %v292 = vmul.f32 %v194, %v194
  %v293 = vmul.f32 %v197, %v197
  %v294 = vmul.f32 %v202, %v202
  %v295 = vmul.f32 %v205, %v205
  %v296 = vmul.f32 %v210, %v210
  %v297 = vmul.f32 %v213, %v213
  %v298 = vmul.f32 %v218, %v218
  %v299 = vmul.f32 %v221, %v221
  %v300 = vmul.f32 %v226, %v226
  %v301 = vmul.f32 %v229, %v229
  %v302 = vsel %vm232, %v286, 0.0
  %v303 = vsel %vm232, %v287, 0.0
  %v304 = vadd.f32 %v302, %v303
  %v305 = vsel %vm232, %v288, 0.0
  %v306 = vadd.f32 %v304, %v305
  %v307 = vsel %vm232, %v289, 0.0
  %v308 = vadd.f32 %v306, %v307
  %v309 = vsel %vm232, %v290, 0.0
  %v310 = vadd.f32 %v308, %v309
  %v311 = vsel %vm232, %v291, 0.0
  %v312 = vadd.f32 %v310, %v311
  %v313 = vsel %vm232, %v292, 0.0
  %v314 = vadd.f32 %v312, %v313
  %v315 = vsel %vm232, %v293, 0.0
  %v316 = vadd.f32 %v314, %v315
  %v317 = vsel %vm232, %v294, 0.0
  %v318 = vadd.f32 %v316, %v317
  %v319 = vsel %vm232, %v295, 0.0
  %v320 = vadd.f32 %v318, %v319
  %v321 = vsel %vm232, %v296, 0.0
  %v322 = vadd.f32 %v320, %v321
  %v323 = vsel %vm232, %v297, 0.0
  %v324 = vadd.f32 %v322, %v323
  %v325 = vsel %vm232, %v298, 0.0
  %v326 = vadd.f32 %v324, %v325
  %v327 = vsel %vm232, %v299, 0.0
  %v328 = vadd.f32 %v326, %v327
  %v329 = vsel %vm232, %v300, 0.0
  %v330 = vadd.f32 %v328, %v329
  %v331 = vsel %vm232, %v301, 0.0
  %v332 = vadd.f32 %v330, %v331
  %v333 = vrot.slane %v332, 4
  %v334 = vadd.f32 %v332, %v333
  %v335 = vrot.slane %v334, 2
  %v336 = vadd.f32 %v334, %v335
  %v337 = vrot.slane %v336, 1
  %v338 = vadd.f32 %v336, %v337
  %vm339 = vcmask 1040384
  %v340 = vsel %vm339, %v285, %v338
  %vm341 = vcmask 58368
  %342 = vst.msk [vmem:[%s3] sm:$0x3] %vm341, %v340
  // Predicated region
  $region10: #{_lambda_.10} parent=0 // pred_check
    _
  $region11: #{_lambda_.10} parent=0 // pred_check_branch
    %344 = sbr.rel (0) target = $region13
  $region12: #{_lambda_.10} parent=0 // pred_region
    _
  $region13: #{_lambda_.10} parent=0 // pred_fallthru
    _
  // Predicated region
  $region14: #{_lambda_.10} parent=0 // pred_check
    _
  $region15: #{_lambda_.10} parent=0 // pred_check_branch
    %346 = sbr.rel (0) target = $region17
  $region16: #{_lambda_.10} parent=0 // pred_region
    _
  $region17: #{_lambda_.10} parent=0 // pred_fallthru
    _
  // Predicated region
  $region18: #{_lambda_.10} parent=0 // pred_check
    _
  $region19: #{_lambda_.10} parent=0 // pred_check_branch
    %348 = sbr.rel (0) target = $region21
  $region20: #{_lambda_.10} parent=0 // pred_region
    _
  $region21: #{_lambda_.10} parent=0 // pred_fallthru
    _
  // Predicated region
  $region22: #{_lambda_.10} parent=0 // pred_check
    _
  $region23: #{_lambda_.10} parent=0 // pred_check_branch
    %350 = sbr.rel (0) target = $region25
  $region24: #{_lambda_.10} parent=0 // pred_region
    _
  $region25: #{_lambda_.10} parent=0 // pred_fallthru
    _

</llo_original>
